<compile_context>
chip_gen: v5e
topology: v5e:2x2
jax: 0.10.0
libtpu: 0.0.40
codegen_flags: <defaults>
</compile_context>

<pallas_src>
import functools

import jax
import jax.numpy as jnp
from jax.experimental import pallas as pl
from jax.experimental.pallas import tpu as pltpu


# ----------------------------------------------------------------------------
# Fused kernel: GroupNorm + QKV + attention + out-proj + residual (one sample)
# ----------------------------------------------------------------------------
def _fused_attention_kernel(x_ref, gamma_ref, beta_ref, gmask_ref,
                            wqkv_ref, bqkv_ref, wo_ref, bo_ref, o_ref,
                            *, scale, inv_count, eps):
    x = x_ref[0]                                           # (C, S) f32, channels-major
    C, S = x.shape

    # ---- GroupNorm (two-pass variance, per-sample per-group statistics) ----
    gm = gmask_ref[...]                                    # (C, C) f32, 1.0 iff same group
    s1 = jnp.sum(x, axis=1, keepdims=True)                 # (C, 1) per-channel sums
    mean = jnp.dot(gm, s1, preferred_element_type=jnp.float32) * inv_count   # (C, 1)
    d = x - mean
    s2 = jnp.sum(d * d, axis=1, keepdims=True)             # (C, 1) per-channel sq-dev sums
    var = jnp.dot(gm, s2, preferred_element_type=jnp.float32) * inv_count    # (C, 1)
    inv_std = jax.lax.rsqrt(var + eps)
    h = d * (inv_std * gamma_ref[...]) + beta_ref[...]     # (C, S) f32

    # ---- fused QKV projection: (3C, C) @ (C, S), bf16 operands, f32 accumulate ----
    qkv = jnp.dot(wqkv_ref[...], h.astype(jnp.bfloat16),
                  preferred_element_type=jnp.float32) + bqkv_ref[...]        # (3C, S) f32
    q = (qkv[0:C] * scale).astype(jnp.bfloat16)            # scale folded once per sample
    k = qkv[C:2 * C].astype(jnp.bfloat16)                  # (C, S): already "k^T"
    v = qkv[2 * C:3 * C].astype(jnp.bfloat16)              # (C, S)

    # ---- re-orient q token-major via a tiny identity NT matmul (MXU, no XLU) ----
    ri = jax.lax.broadcasted_iota(jnp.int32, (S, S), 0)
    ci = jax.lax.broadcasted_iota(jnp.int32, (S, S), 1)
    eye = (ri == ci).astype(jnp.bfloat16)
    q_t = jax.lax.dot_general(eye, q, (((1,), (1,)), ((), ())),
                              preferred_element_type=jnp.float32
                              ).astype(jnp.bfloat16)       # (S, C) == q^T (exact)

    # ---- attention: canonical (S,C)@(C,S) scores, f32 softmax, PV matmul ----
    s_mat = jnp.dot(q_t, k, preferred_element_type=jnp.float32)              # (S, S) f32
    m = jnp.max(s_mat, axis=-1, keepdims=True)
    e = jnp.exp(s_mat - m)
    p = e * pl.reciprocal(jnp.sum(e, axis=-1, keepdims=True), approx=True)   # (S, S)
    # attn[c, i] = sum_j v[c, j] * p[i, j]   -> channels-major attention output
    attn = jax.lax.dot_general(v, p.astype(jnp.bfloat16), (((1,), (1,)), ((), ())),
                               preferred_element_type=jnp.float32)           # (C, S)

    # ---- output projection + bias + residual (all channels-major, lane-dense) ----
    out = jnp.dot(wo_ref[...], attn.astype(jnp.bfloat16),
                  preferred_element_type=jnp.float32)                        # (C, S)
    o_ref[0] = (out + bo_ref[...] + x).astype(o_ref.dtype)


# ----------------------------------------------------------------------------
# Forward wrapper (NCHW in / NCHW out, matching the PyTorch module)
# Weights use the PyTorch Conv2d layout: (C_out, C_in).
# ----------------------------------------------------------------------------
def attention_forward(params, x_nchw, *, groups, eps=1e-5):
    B, C, H, W = x_nchw.shape
    S = H * W
    # Pure reshape of NCHW (no transpose, no extra HBM pass).
    x_cs = x_nchw.reshape(B, C, S).astype(jnp.float32)

    cg = C // groups
    gid = jnp.arange(C, dtype=jnp.int32) // cg
    gmask = (gid[:, None] == gid[None, :]).astype(jnp.float32)   # (C, C) block-diagonal

    wqkv = jnp.concatenate([params["wq"], params["wk"], params["wv"]],
                           axis=0).astype(jnp.bfloat16)          # (3C, C)
    bqkv = jnp.concatenate([params["bq"], params["bk"], params["bv"]],
                           axis=0).reshape(3 * C, 1).astype(jnp.float32)
    gamma = params["gamma"].reshape(C, 1).astype(jnp.float32)
    beta = params["beta"].reshape(C, 1).astype(jnp.float32)
    wo = params["wo"].astype(jnp.bfloat16)                       # (C, C)
    bo = params["bo"].reshape(C, 1).astype(jnp.float32)

    # Explicit VMEM budget (double-buffered blocks + in-kernel working set).
    block_bytes = C * S * 4
    weight_bytes = (C * C * 4) + (3 * C * C * 2) + (C * C * 2) + (8 * C * 4)
    work_bytes = 3 * C * S * 4 + 2 * S * S * 4 + 4 * C * S * 4 + 3 * C * S * 2
    needed = 2 * (2 * block_bytes + weight_bytes) + work_bytes
    vmem_limit = int(min(48 * 2 ** 20, max(16 * 2 ** 20, 2 * needed)))

    kernel = functools.partial(_fused_attention_kernel,
                               scale=float(C) ** (-0.5),
                               inv_count=1.0 / float(cg * S),
                               eps=float(eps))

    x_spec = pl.BlockSpec((1, C, S), lambda b: (b, 0, 0))
    out_spec = pl.BlockSpec((1, C, S), lambda b: (b, 0, 0))
    full = lambda shape: pl.BlockSpec(shape, lambda b: (0,) * len(shape))

    out = pl.pallas_call(
        kernel,
        out_shape=jax.ShapeDtypeStruct((B, C, S), jnp.float32),
        grid=(B,),
        in_specs=[x_spec,
                  full((C, 1)), full((C, 1)), full((C, C)),
                  full((3 * C, C)), full((3 * C, 1)),
                  full((C, C)), full((C, 1))],
        out_specs=out_spec,
        compiler_params=pltpu.CompilerParams(
            dimension_semantics=("parallel",),
            vmem_limit_bytes=vmem_limit),
    )(x_cs, gamma, beta, gmask, wqkv, bqkv, wo, bo)

    return out.reshape(B, C, H, W)


# ----------------------------------------------------------------------------
# Pure-JAX reference (mirrors the PyTorch module) for a correctness check
# ----------------------------------------------------------------------------
def attention_reference(params, x_nchw, *, groups, eps=1e-5):
    B, C, H, W = x_nchw.shape
    x = x_nchw.astype(jnp.float32)
    cg = C // groups
    xg = x.reshape(B, groups, cg, H * W)
    mean = xg.mean(axis=(2, 3), keepdims=True)
    var = xg.var(axis=(2, 3), keepdims=True)
    xn = ((xg - mean) / jnp.sqrt(var + eps)).reshape(B, C, H, W)
    h = xn * params["gamma"].reshape(1, C, 1, 1) + params["beta"].reshape(1, C, 1, 1)
    hf = jnp.transpose(h, (0, 2, 3, 1)).reshape(B, H * W, C)
    q = hf @ params["wq"].T + params["bq"]
    k = hf @ params["wk"].T + params["bk"]
    v = hf @ params["wv"].T + params["bv"]
    s = jnp.einsum("bic,bjc->bij", q, k) * (float(C) ** (-0.5))
    p = jax.nn.softmax(s, axis=-1)
    a = jnp.einsum("bij,bjc->bic", p, v)
    o = a @ params["wo"].T + params["bo"]
    o = jnp.transpose(o.reshape(B, H, W, C), (0, 3, 1, 2))
    return o + x


# ----------------------------------------------------------------------------
if __name__ == "__main__":
    # Small shapes consistent with where Attention sits in the UNet: low spatial
    # resolution, wide channel dim divisible by groups=32.
    B, DIM, H, W, GROUPS = 2, 128, 8, 8, 32

    key = jax.random.PRNGKey(0)
    ks = jax.random.split(key, 10)
    wstd = float(DIM) ** (-0.5)
    # Weights in PyTorch Conv2d layout: (C_out, C_in).
    params = {
        "gamma": 1.0 + 0.1 * jax.random.normal(ks[0], (DIM,), jnp.float32),
        "beta": 0.1 * jax.random.normal(ks[1], (DIM,), jnp.float32),
        "wq": jax.random.normal(ks[2], (DIM, DIM), jnp.float32) * wstd,
        "wk": jax.random.normal(ks[3], (DIM, DIM), jnp.float32) * wstd,
        "wv": jax.random.normal(ks[4], (DIM, DIM), jnp.float32) * wstd,
        "wo": jax.random.normal(ks[5], (DIM, DIM), jnp.float32) * wstd,
        "bq": 0.02 * jax.random.normal(ks[6], (DIM,), jnp.float32),
        "bk": 0.02 * jax.random.normal(ks[7], (DIM,), jnp.float32),
        "bv": 0.02 * jax.random.normal(ks[8], (DIM,), jnp.float32),
        "bo": jnp.zeros((DIM,), jnp.float32),
    }
    x = jax.random.normal(ks[9], (B, DIM, H, W), jnp.float32)

    fwd = jax.jit(functools.partial(attention_forward, groups=GROUPS))
    out = fwd(params, x)
    jax.block_until_ready(out)

    assert out.shape == (B, DIM, H, W), out.shape
    assert bool(jnp.all(jnp.isfinite(out)))

    ref = attention_reference(params, x, groups=GROUPS)
    max_err = float(jnp.max(jnp.abs(out - ref)))
    assert max_err < 1e-1, f"max abs error vs reference: {max_err}"

    print("KERNEL_OK")
</pallas_src>

<mosaic_0001>
module attributes {stable_mosaic.version = 11 : i64} {
  func.func @_fused_attention_kernel(%arg0: i32, %arg1: memref<1x128x64xf32, #tpu.memory_space<vmem>>, %arg2: memref<128x1xf32, #tpu.memory_space<vmem>>, %arg3: memref<128x1xf32, #tpu.memory_space<vmem>>, %arg4: memref<128x128xf32, #tpu.memory_space<vmem>>, %arg5: memref<384x128xbf16, #tpu.memory_space<vmem>>, %arg6: memref<384x1xf32, #tpu.memory_space<vmem>>, %arg7: memref<128x128xbf16, #tpu.memory_space<vmem>>, %arg8: memref<128x1xf32, #tpu.memory_space<vmem>>, %arg9: memref<1x128x64xf32, #tpu.memory_space<vmem>>) attributes {dimension_semantics = [#tpu.dimension_semantics<parallel>], iteration_bounds = array<i64: 2>, scalar_prefetch = 0 : i64, scratch_operands = 0 : i64, tpu.core_type = #tpu.core_type<tc>, window_params = [{transform_indices = @transform_0, window_bounds = array<i64: 1, 128, 64>}, {pipeline_mode = #tpu.pipeline_mode<synchronous>, transform_indices = @transform_1, window_bounds = array<i64: 128, 1>}, {pipeline_mode = #tpu.pipeline_mode<synchronous>, transform_indices = @transform_2, window_bounds = array<i64: 128, 1>}, {pipeline_mode = #tpu.pipeline_mode<synchronous>, transform_indices = @transform_3, window_bounds = array<i64: 128, 128>}, {pipeline_mode = #tpu.pipeline_mode<synchronous>, transform_indices = @transform_4, window_bounds = array<i64: 384, 128>}, {pipeline_mode = #tpu.pipeline_mode<synchronous>, transform_indices = @transform_5, window_bounds = array<i64: 384, 1>}, {pipeline_mode = #tpu.pipeline_mode<synchronous>, transform_indices = @transform_6, window_bounds = array<i64: 128, 128>}, {pipeline_mode = #tpu.pipeline_mode<synchronous>, transform_indices = @transform_7, window_bounds = array<i64: 128, 1>}, {transform_indices = @transform_8, window_bounds = array<i64: 1, 128, 64>}]} {
    %c0 = arith.constant 0 : index
    %c0_0 = arith.constant 0 : index
    %c0_1 = arith.constant 0 : index
    %0 = vector.load %arg1[%c0, %c0_0, %c0_1] : memref<1x128x64xf32, #tpu.memory_space<vmem>>, vector<1x128x64xf32>
    %1 = vector.shape_cast %0 : vector<1x128x64xf32> to vector<128x64xf32>
    %c0_2 = arith.constant 0 : index
    %c0_3 = arith.constant 0 : index
    %2 = vector.load %arg4[%c0_2, %c0_3] : memref<128x128xf32, #tpu.memory_space<vmem>>, vector<128x128xf32>
    %cst = arith.constant dense<0.000000e+00> : vector<128xf32>
    %3 = vector.multi_reduction <add>, %1, %cst [1] : vector<128x64xf32> to vector<128xf32>
    %4 = vector.shape_cast %3 : vector<128xf32> to vector<128x1xf32>
    %cst_4 = arith.constant dense<0.000000e+00> : vector<128x1xf32>
    %5 = tpu.matmul %2, %4, %cst_4 {dimension_numbers = #tpu.dot_dimension_numbers<[1], [0], [0], [1], [0, 0, 1, 1], [], []>} : vector<128x128xf32>, vector<128x1xf32>, vector<128x1xf32> -> vector<128x1xf32>
    %cst_5 = arith.constant 3.906250e-03 : f32
    %6 = vector.broadcast %cst_5 : f32 to vector<128x1xf32>
    %7 = arith.mulf %5, %6 : vector<128x1xf32>
    %8 = vector.broadcast %7 : vector<128x1xf32> to vector<128x64xf32>
    %9 = arith.subf %1, %8 : vector<128x64xf32>
    %10 = arith.mulf %9, %9 : vector<128x64xf32>
    %cst_6 = arith.constant dense<0.000000e+00> : vector<128xf32>
    %11 = vector.multi_reduction <add>, %10, %cst_6 [1] : vector<128x64xf32> to vector<128xf32>
    %12 = vector.shape_cast %11 : vector<128xf32> to vector<128x1xf32>
    %cst_7 = arith.constant dense<0.000000e+00> : vector<128x1xf32>
    %13 = tpu.matmul %2, %12, %cst_7 {dimension_numbers = #tpu.dot_dimension_numbers<[1], [0], [0], [1], [0, 0, 1, 1], [], []>} : vector<128x128xf32>, vector<128x1xf32>, vector<128x1xf32> -> vector<128x1xf32>
    %cst_8 = arith.constant 3.906250e-03 : f32
    %14 = vector.broadcast %cst_8 : f32 to vector<128x1xf32>
    %15 = arith.mulf %13, %14 : vector<128x1xf32>
    %cst_9 = arith.constant 9.99999974E-6 : f32
    %16 = vector.broadcast %cst_9 : f32 to vector<128x1xf32>
    %17 = arith.addf %15, %16 : vector<128x1xf32>
    %18 = math.rsqrt %17 : vector<128x1xf32>
    %c0_10 = arith.constant 0 : index
    %c0_11 = arith.constant 0 : index
    %19 = vector.load %arg2[%c0_10, %c0_11] : memref<128x1xf32, #tpu.memory_space<vmem>>, vector<128x1xf32>
    %20 = arith.mulf %18, %19 : vector<128x1xf32>
    %21 = vector.broadcast %20 : vector<128x1xf32> to vector<128x64xf32>
    %22 = arith.mulf %9, %21 : vector<128x64xf32>
    %c0_12 = arith.constant 0 : index
    %c0_13 = arith.constant 0 : index
    %23 = vector.load %arg3[%c0_12, %c0_13] : memref<128x1xf32, #tpu.memory_space<vmem>>, vector<128x1xf32>
    %24 = vector.broadcast %23 : vector<128x1xf32> to vector<128x64xf32>
    %25 = arith.addf %22, %24 : vector<128x64xf32>
    %c0_14 = arith.constant 0 : index
    %c0_15 = arith.constant 0 : index
    %26 = vector.load %arg5[%c0_14, %c0_15] : memref<384x128xbf16, #tpu.memory_space<vmem>>, vector<384x128xbf16>
    %27 = arith.truncf %25 : vector<128x64xf32> to vector<128x64xbf16>
    %cst_16 = arith.constant dense<0.000000e+00> : vector<384x64xf32>
    %28 = tpu.matmul %26, %27, %cst_16 {dimension_numbers = #tpu.dot_dimension_numbers<[1], [0], [0], [1], [0, 0, 1, 1], [], []>} : vector<384x128xbf16>, vector<128x64xbf16>, vector<384x64xf32> -> vector<384x64xf32>
    %c0_17 = arith.constant 0 : index
    %c0_18 = arith.constant 0 : index
    %29 = vector.load %arg6[%c0_17, %c0_18] : memref<384x1xf32, #tpu.memory_space<vmem>>, vector<384x1xf32>
    %30 = vector.broadcast %29 : vector<384x1xf32> to vector<384x64xf32>
    %31 = arith.addf %28, %30 : vector<384x64xf32>
    %32 = vector.extract_strided_slice %31 {offsets = [0, 0], sizes = [128, 64], strides = [1, 1]} : vector<384x64xf32> to vector<128x64xf32>
    %cst_19 = arith.constant 0.0883883461 : f32
    %33 = vector.broadcast %cst_19 : f32 to vector<128x64xf32>
    %34 = arith.mulf %32, %33 : vector<128x64xf32>
    %35 = arith.truncf %34 : vector<128x64xf32> to vector<128x64xbf16>
    %36 = vector.extract_strided_slice %31 {offsets = [128, 0], sizes = [128, 64], strides = [1, 1]} : vector<384x64xf32> to vector<128x64xf32>
    %37 = arith.truncf %36 : vector<128x64xf32> to vector<128x64xbf16>
    %38 = vector.extract_strided_slice %31 {offsets = [256, 0], sizes = [128, 64], strides = [1, 1]} : vector<384x64xf32> to vector<128x64xf32>
    %39 = arith.truncf %38 : vector<128x64xf32> to vector<128x64xbf16>
    %40 = tpu.iota {dimensions = array<i32: 0>} : vector<64x64xi32>
    %41 = tpu.iota {dimensions = array<i32: 1>} : vector<64x64xi32>
    %42 = arith.cmpi eq, %40, %41 : vector<64x64xi32>
    %43 = arith.extui %42 : vector<64x64xi1> to vector<64x64xi32>
    %44 = arith.sitofp %43 : vector<64x64xi32> to vector<64x64xf32>
    %45 = arith.truncf %44 : vector<64x64xf32> to vector<64x64xbf16>
    %cst_20 = arith.constant dense<0.000000e+00> : vector<64x128xf32>
    %46 = tpu.matmul %45, %35, %cst_20 {dimension_numbers = #tpu.dot_dimension_numbers<[1], [1], [0], [0], [0, 0, 1, 0], [], []>} : vector<64x64xbf16>, vector<128x64xbf16>, vector<64x128xf32> -> vector<64x128xf32>
    %47 = arith.truncf %46 : vector<64x128xf32> to vector<64x128xbf16>
    %cst_21 = arith.constant dense<0.000000e+00> : vector<64x64xf32>
    %48 = tpu.matmul %47, %37, %cst_21 {dimension_numbers = #tpu.dot_dimension_numbers<[1], [0], [0], [1], [0, 0, 1, 1], [], []>} : vector<64x128xbf16>, vector<128x64xbf16>, vector<64x64xf32> -> vector<64x64xf32>
    %cst_22 = arith.constant dense<0xFF800000> : vector<64xf32>
    %49 = vector.multi_reduction <maximumf>, %48, %cst_22 [1] : vector<64x64xf32> to vector<64xf32>
    %50 = vector.shape_cast %49 : vector<64xf32> to vector<64x1xf32>
    %51 = vector.broadcast %50 : vector<64x1xf32> to vector<64x64xf32>
    %52 = arith.subf %48, %51 : vector<64x64xf32>
    %53 = math.exp %52 : vector<64x64xf32>
    %cst_23 = arith.constant dense<0.000000e+00> : vector<64xf32>
    %54 = vector.multi_reduction <add>, %53, %cst_23 [1] : vector<64x64xf32> to vector<64xf32>
    %55 = vector.shape_cast %54 : vector<64xf32> to vector<64x1xf32>
    %56 = tpu.reciprocal %55 {approx = true} : vector<64x1xf32> -> vector<64x1xf32>
    %57 = vector.broadcast %56 : vector<64x1xf32> to vector<64x64xf32>
    %58 = arith.mulf %53, %57 : vector<64x64xf32>
    %59 = arith.truncf %58 : vector<64x64xf32> to vector<64x64xbf16>
    %cst_24 = arith.constant dense<0.000000e+00> : vector<128x64xf32>
    %60 = tpu.matmul %39, %59, %cst_24 {dimension_numbers = #tpu.dot_dimension_numbers<[1], [1], [0], [0], [0, 0, 1, 0], [], []>} : vector<128x64xbf16>, vector<64x64xbf16>, vector<128x64xf32> -> vector<128x64xf32>
    %c0_25 = arith.constant 0 : index
    %c0_26 = arith.constant 0 : index
    %61 = vector.load %arg7[%c0_25, %c0_26] : memref<128x128xbf16, #tpu.memory_space<vmem>>, vector<128x128xbf16>
    %62 = arith.truncf %60 : vector<128x64xf32> to vector<128x64xbf16>
    %cst_27 = arith.constant dense<0.000000e+00> : vector<128x64xf32>
    %63 = tpu.matmul %61, %62, %cst_27 {dimension_numbers = #tpu.dot_dimension_numbers<[1], [0], [0], [1], [0, 0, 1, 1], [], []>} : vector<128x128xbf16>, vector<128x64xbf16>, vector<128x64xf32> -> vector<128x64xf32>
    %c0_28 = arith.constant 0 : index
    %c0_29 = arith.constant 0 : index
    %64 = vector.load %arg8[%c0_28, %c0_29] : memref<128x1xf32, #tpu.memory_space<vmem>>, vector<128x1xf32>
    %65 = vector.broadcast %64 : vector<128x1xf32> to vector<128x64xf32>
    %66 = arith.addf %63, %65 : vector<128x64xf32>
    %67 = arith.addf %66, %1 : vector<128x64xf32>
    %c0_30 = arith.constant 0 : index
    %c0_31 = arith.constant 0 : index
    %c0_32 = arith.constant 0 : index
    %68 = vector.load %arg9[%c0_30, %c0_31, %c0_32] : memref<1x128x64xf32, #tpu.memory_space<vmem>>, vector<1x128x64xf32>
    %69 = vector.shape_cast %68 : vector<1x128x64xf32> to vector<128x64xf32>
    %70 = vector.shape_cast %67 : vector<128x64xf32> to vector<1x128x64xf32>
    tpu.vector_store %arg9[%c0_30, %c0_31, %c0_32], %70 {strides = array<i32>} : memref<1x128x64xf32, #tpu.memory_space<vmem>>, vector<1x128x64xf32>,
    return
  }
  func.func @transform_0(%arg0: i32) -> (i32, i32, i32) {
    %c0_i32 = arith.constant 0 : i32
    %c0_i32_0 = arith.constant 0 : i32
    %c0_i32_1 = arith.constant 0 : i32
    return %arg0, %c0_i32, %c0_i32_0 : i32, i32, i32
  }
  func.func @transform_1(%arg0: i32) -> (i32, i32) {
    %c0_i32 = arith.constant 0 : i32
    %c0_i32_0 = arith.constant 0 : i32
    %c0_i32_1 = arith.constant 0 : i32
    return %c0_i32, %c0_i32_0 : i32, i32
  }
  func.func @transform_2(%arg0: i32) -> (i32, i32) {
    %c0_i32 = arith.constant 0 : i32
    %c0_i32_0 = arith.constant 0 : i32
    %c0_i32_1 = arith.constant 0 : i32
    return %c0_i32, %c0_i32_0 : i32, i32
  }
  func.func @transform_3(%arg0: i32) -> (i32, i32) {
    %c0_i32 = arith.constant 0 : i32
    %c0_i32_0 = arith.constant 0 : i32
    %c0_i32_1 = arith.constant 0 : i32
    return %c0_i32, %c0_i32_0 : i32, i32
  }
  func.func @transform_4(%arg0: i32) -> (i32, i32) {
    %c0_i32 = arith.constant 0 : i32
    %c0_i32_0 = arith.constant 0 : i32
    %c0_i32_1 = arith.constant 0 : i32
    return %c0_i32, %c0_i32_0 : i32, i32
  }
  func.func @transform_5(%arg0: i32) -> (i32, i32) {
    %c0_i32 = arith.constant 0 : i32
    %c0_i32_0 = arith.constant 0 : i32
    %c0_i32_1 = arith.constant 0 : i32
    return %c0_i32, %c0_i32_0 : i32, i32
  }
  func.func @transform_6(%arg0: i32) -> (i32, i32) {
    %c0_i32 = arith.constant 0 : i32
    %c0_i32_0 = arith.constant 0 : i32
    %c0_i32_1 = arith.constant 0 : i32
    return %c0_i32, %c0_i32_0 : i32, i32
  }
  func.func @transform_7(%arg0: i32) -> (i32, i32) {
    %c0_i32 = arith.constant 0 : i32
    %c0_i32_0 = arith.constant 0 : i32
    %c0_i32_1 = arith.constant 0 : i32
    return %c0_i32, %c0_i32_0 : i32, i32
  }
  func.func @transform_8(%arg0: i32) -> (i32, i32, i32) {
    %c0_i32 = arith.constant 0 : i32
    %c0_i32_0 = arith.constant 0 : i32
    %c0_i32_1 = arith.constant 0 : i32
    return %arg0, %c0_i32, %c0_i32_0 : i32, i32, i32
  }
}

</mosaic_0001>

<llo_original>
// kernel: attention_forward.1
$region0: #{attention_forward.1}
  #allocation0 [shape = 'u32[]', space=smem, size = 0x4, offset = 0x4, fixed_abs, tag = 'smem constant byte address 0x4 - core index']
  #allocation1 [shape = 'u32[72,128]{1,0:T(1,128)}', space=vmem, size = 0x9000, scoped, tag = 'internal scratch']
  %s0 = inlined_call_operand.vmem [shape: f32[2,128,64], index: 0, kind: input, shape index: {}]
  %s1 = inlined_call_operand.vmem [shape: f32[128,1], index: 1, kind: input, shape index: {}]
  %s2 = inlined_call_operand.vmem [shape: f32[128,1], index: 2, kind: input, shape index: {}]
  %s3 = inlined_call_operand.vmem [shape: f32[128,128], index: 3, kind: input, shape index: {}]
  %s4 = inlined_call_operand.vmem [shape: bf16[384,128], index: 4, kind: input, shape index: {}]
  %s5 = inlined_call_operand.vmem [shape: f32[384,1], index: 5, kind: input, shape index: {}]
  %s6 = inlined_call_operand.vmem [shape: bf16[128,128], index: 6, kind: input, shape index: {}]
  %s7 = inlined_call_operand.vmem [shape: f32[128,1], index: 7, kind: input, shape index: {}]
  %s8 = inlined_call_operand.vmem [shape: f32[2,128,64], index: 8, kind: output, shape index: {}]
  %s9 = sld [smem:[#allocation0]]
  $region65: #{attention_forward.1} parent=0
    _
  %s11 = ssub.s32 1, %s9
  %s12 = scalar_select 0, %s11, %s9
  loop: start=0, step=1, limit=4
  $region2: #{attention_forward.1} parent=0 // loop_pre_header
    _
  $region3: #{attention_forward.1} parent=0 // loop_header
    %s14 = sphi 0, %s18
    %p15 = scmp.ge.s32.totalorder %s14, 4
    %s24 = sphi 0, %s26
    %s27 = sphi 0, %s24
    %s28 = sphi 0, %s27
    %s44 = sphi 0, %s28
    %s48 = sphi 0, %s48
    %s50 = sphi 0, %s48
    %s51 = sphi 0, %s50
    %s65 = sphi 0, %s51
    %s69 = sphi 0, %s69
    %s71 = sphi 0, %s69
    %s72 = sphi 0, %s71
    %s86 = sphi 0, %s72
    %s90 = sphi 0, %s90
    %s92 = sphi 0, %s90
    %s93 = sphi 0, %s92
    %s107 = sphi 0, %s93
    %s111 = sphi 0, %s111
    %s113 = sphi 0, %s111
    %s114 = sphi 0, %s113
    %s128 = sphi 0, %s114
    %s132 = sphi 0, %s132
    %s134 = sphi 0, %s132
    %s135 = sphi 0, %s134
    %s149 = sphi 0, %s135
    %s153 = sphi 0, %s153
    %s155 = sphi 0, %s153
    %s156 = sphi 0, %s155
    %s170 = sphi 0, %s156
    %s174 = sphi 0, %s174
    %s176 = sphi 0, %s174
    %s177 = sphi 0, %s176
    %s191 = sphi 0, %s177
    %s197 = sphi 0, %s199
    %s200 = sphi 0, %s197
    %s201 = sphi 0, %s200
    %s217 = sphi 0, %s201
  $region4: #{attention_forward.1} parent=0 // loop_header_branch
    %17 = sbr.rel (%p15) target = $region8
  $region5: #{attention_forward.1} parent=0 // loop_body
    %s19 = ssub.s32 %s14, 1
    %s20 = ssub.s32 %s14, 2
    %s21 = sadd.s32 %s14, 1
    %s22 = ssub.s32 %s14, %s21
    %p23 = scmp.eq.s32.totalorder %s22, 0
    %s25 = sadd.s32 %s24, 1
    %s26 = scalar_select %p23, %s24, %s25
    %p29 = pneg %p23
    %p30 = scmp.eq.s32.totalorder %s14, 1
    %p31 = por %p29, %p30
    %p32 = scmp.ne.s32.totalorder %s24, %s27
    %p33 = scmp.eq.s32.totalorder %s14, 0
    %p34 = por %p32, %p33
    %p35 = scmp.ne.s32.totalorder %s24, %s27
    %p36 = scmp.eq.s32.totalorder %s19, 1
    %p37 = por %p35, %p36
    %p38 = scmp.ne.s32.totalorder %s27, %s28
    %p39 = scmp.eq.s32.totalorder %s19, 0
    %p40 = por %p38, %p39
    %p41 = scmp.ne.s32.totalorder %s27, %s28
    %p42 = scmp.eq.s32.totalorder %s20, 1
    %p43 = por %p41, %p42
    %p45 = scmp.ne.s32.totalorder %s28, %s44
    %p46 = scmp.eq.s32.totalorder %s20, 0
    %p47 = por %p45, %p46
    %s49 = sadd.s32 %s48, 1
    %p52 = scmp.eq.s32.totalorder %s14, 1
    %p53 = scmp.ne.s32.totalorder %s48, %s50
    %p54 = scmp.eq.s32.totalorder %s14, 0
    %p55 = por %p53, %p54
    %p56 = scmp.ne.s32.totalorder %s48, %s50
    %p57 = scmp.eq.s32.totalorder %s19, 1
    %p58 = por %p56, %p57
    %p59 = scmp.ne.s32.totalorder %s50, %s51
    %p60 = scmp.eq.s32.totalorder %s19, 0
    %p61 = por %p59, %p60
    %p62 = scmp.ne.s32.totalorder %s50, %s51
    %p63 = scmp.eq.s32.totalorder %s20, 1
    %p64 = por %p62, %p63
    %p66 = scmp.ne.s32.totalorder %s51, %s65
    %p67 = scmp.eq.s32.totalorder %s20, 0
    %p68 = por %p66, %p67
    %s70 = sadd.s32 %s69, 1
    %p73 = scmp.eq.s32.totalorder %s14, 1
    %p74 = scmp.ne.s32.totalorder %s69, %s71
    %p75 = scmp.eq.s32.totalorder %s14, 0
    %p76 = por %p74, %p75
    %p77 = scmp.ne.s32.totalorder %s69, %s71
    %p78 = scmp.eq.s32.totalorder %s19, 1
    %p79 = por %p77, %p78
    %p80 = scmp.ne.s32.totalorder %s71, %s72
    %p81 = scmp.eq.s32.totalorder %s19, 0
    %p82 = por %p80, %p81
    %p83 = scmp.ne.s32.totalorder %s71, %s72
    %p84 = scmp.eq.s32.totalorder %s20, 1
    %p85 = por %p83, %p84
    %p87 = scmp.ne.s32.totalorder %s72, %s86
    %p88 = scmp.eq.s32.totalorder %s20, 0
    %p89 = por %p87, %p88
    %s91 = sadd.s32 %s90, 1
    %p94 = scmp.eq.s32.totalorder %s14, 1
    %p95 = scmp.ne.s32.totalorder %s90, %s92
    %p96 = scmp.eq.s32.totalorder %s14, 0
    %p97 = por %p95, %p96
    %p98 = scmp.ne.s32.totalorder %s90, %s92
    %p99 = scmp.eq.s32.totalorder %s19, 1
    %p100 = por %p98, %p99
    %p101 = scmp.ne.s32.totalorder %s92, %s93
    %p102 = scmp.eq.s32.totalorder %s19, 0
    %p103 = por %p101, %p102
    %p104 = scmp.ne.s32.totalorder %s92, %s93
    %p105 = scmp.eq.s32.totalorder %s20, 1
    %p106 = por %p104, %p105
    %p108 = scmp.ne.s32.totalorder %s93, %s107
    %p109 = scmp.eq.s32.totalorder %s20, 0
    %p110 = por %p108, %p109
    %s112 = sadd.s32 %s111, 1
    %p115 = scmp.eq.s32.totalorder %s14, 1
    %p116 = scmp.ne.s32.totalorder %s111, %s113
    %p117 = scmp.eq.s32.totalorder %s14, 0
    %p118 = por %p116, %p117
    %p119 = scmp.ne.s32.totalorder %s111, %s113
    %p120 = scmp.eq.s32.totalorder %s19, 1
    %p121 = por %p119, %p120
    %p122 = scmp.ne.s32.totalorder %s113, %s114
    %p123 = scmp.eq.s32.totalorder %s19, 0
    %p124 = por %p122, %p123
    %p125 = scmp.ne.s32.totalorder %s113, %s114
    %p126 = scmp.eq.s32.totalorder %s20, 1
    %p127 = por %p125, %p126
    %p129 = scmp.ne.s32.totalorder %s114, %s128
    %p130 = scmp.eq.s32.totalorder %s20, 0
    %p131 = por %p129, %p130
    %s133 = sadd.s32 %s132, 1
    %p136 = scmp.eq.s32.totalorder %s14, 1
    %p137 = scmp.ne.s32.totalorder %s132, %s134
    %p138 = scmp.eq.s32.totalorder %s14, 0
    %p139 = por %p137, %p138
    %p140 = scmp.ne.s32.totalorder %s132, %s134
    %p141 = scmp.eq.s32.totalorder %s19, 1
    %p142 = por %p140, %p141
    %p143 = scmp.ne.s32.totalorder %s134, %s135
    %p144 = scmp.eq.s32.totalorder %s19, 0
    %p145 = por %p143, %p144
    %p146 = scmp.ne.s32.totalorder %s134, %s135
    %p147 = scmp.eq.s32.totalorder %s20, 1
    %p148 = por %p146, %p147
    %p150 = scmp.ne.s32.totalorder %s135, %s149
    %p151 = scmp.eq.s32.totalorder %s20, 0
    %p152 = por %p150, %p151
    %s154 = sadd.s32 %s153, 1
    %p157 = scmp.eq.s32.totalorder %s14, 1
    %p158 = scmp.ne.s32.totalorder %s153, %s155
    %p159 = scmp.eq.s32.totalorder %s14, 0
    %p160 = por %p158, %p159
    %p161 = scmp.ne.s32.totalorder %s153, %s155
    %p162 = scmp.eq.s32.totalorder %s19, 1
    %p163 = por %p161, %p162
    %p164 = scmp.ne.s32.totalorder %s155, %s156
    %p165 = scmp.eq.s32.totalorder %s19, 0
    %p166 = por %p164, %p165
    %p167 = scmp.ne.s32.totalorder %s155, %s156
    %p168 = scmp.eq.s32.totalorder %s20, 1
    %p169 = por %p167, %p168
    %p171 = scmp.ne.s32.totalorder %s156, %s170
    %p172 = scmp.eq.s32.totalorder %s20, 0
    %p173 = por %p171, %p172
    %s175 = sadd.s32 %s174, 1
    %p178 = scmp.eq.s32.totalorder %s14, 1
    %p179 = scmp.ne.s32.totalorder %s174, %s176
    %p180 = scmp.eq.s32.totalorder %s14, 0
    %p181 = por %p179, %p180
    %p182 = scmp.ne.s32.totalorder %s174, %s176
    %p183 = scmp.eq.s32.totalorder %s19, 1
    %p184 = por %p182, %p183
    %p185 = scmp.ne.s32.totalorder %s176, %s177
    %p186 = scmp.eq.s32.totalorder %s19, 0
    %p187 = por %p185, %p186
    %p188 = scmp.ne.s32.totalorder %s176, %s177
    %p189 = scmp.eq.s32.totalorder %s20, 1
    %p190 = por %p188, %p189
    %p192 = scmp.ne.s32.totalorder %s177, %s191
    %p193 = scmp.eq.s32.totalorder %s20, 0
    %p194 = por %p192, %p193
    %s195 = ssub.s32 %s14, %s21
    %p196 = scmp.eq.s32.totalorder %s195, 0
    %s198 = sadd.s32 %s197, 1
    %s199 = scalar_select %p196, %s197, %s198
    %p202 = pneg %p196
    %p203 = scmp.eq.s32.totalorder %s14, 1
    %p204 = por %p202, %p203
    %p205 = scmp.ne.s32.totalorder %s197, %s200
    %p206 = scmp.eq.s32.totalorder %s14, 0
    %p207 = por %p205, %p206
    %p208 = scmp.ne.s32.totalorder %s197, %s200
    %p209 = scmp.eq.s32.totalorder %s19, 1
    %p210 = por %p208, %p209
    %p211 = scmp.ne.s32.totalorder %s200, %s201
    %p212 = scmp.eq.s32.totalorder %s19, 0
    %p213 = por %p211, %p212
    %p214 = scmp.ne.s32.totalorder %s200, %s201
    %p215 = scmp.eq.s32.totalorder %s20, 1
    %p216 = por %p214, %p215
    %p218 = scmp.ne.s32.totalorder %s201, %s217
    %p219 = scmp.eq.s32.totalorder %s20, 0
    %p220 = por %p218, %p219
    %p221 = scmp.le.s32.totalorder 1, %s14
    %p222 = scmp.lt.s32.totalorder %s14, 3
    %p223 = pnand %p221, %p222
    %p224 = pneg %p223
    // Predicated region
    $region9: #{attention_forward.1} parent=5 // pred_check
      _
    $region10: #{attention_forward.1} parent=5 // pred_check_branch
      %226 = sbr.rel (%p223) target = $region12
    $region11: #{attention_forward.1} parent=5 // pred_region
      %s227 = ssub.s32 %s14, 1
      // Predicated region
      $region13: #{attention_forward.1} parent=11 // pred_check
        %p228 = pneg %p61
      $region14: #{attention_forward.1} parent=11 // pred_check_branch
        %230 = sbr.rel (%p228) target = $region16
      $region15: #{attention_forward.1} parent=11 // pred_region
        _
      $region16: #{attention_forward.1} parent=11 // pred_fallthru
        _
      // Predicated region
      $region17: #{attention_forward.1} parent=11 // pred_check
        %p231 = pneg %p82
      $region18: #{attention_forward.1} parent=11 // pred_check_branch
        %233 = sbr.rel (%p231) target = $region20
      $region19: #{attention_forward.1} parent=11 // pred_region
        _
      $region20: #{attention_forward.1} parent=11 // pred_fallthru
        _
      // Predicated region
      $region21: #{attention_forward.1} parent=11 // pred_check
        %p234 = pneg %p103
      $region22: #{attention_forward.1} parent=11 // pred_check_branch
        %236 = sbr.rel (%p234) target = $region24
      $region23: #{attention_forward.1} parent=11 // pred_region
        _
      $region24: #{attention_forward.1} parent=11 // pred_fallthru
        _
      // Predicated region
      $region25: #{attention_forward.1} parent=11 // pred_check
        %p237 = pneg %p124
      $region26: #{attention_forward.1} parent=11 // pred_check_branch
        %239 = sbr.rel (%p237) target = $region28
      $region27: #{attention_forward.1} parent=11 // pred_region
        _
      $region28: #{attention_forward.1} parent=11 // pred_fallthru
        _
      // Predicated region
      $region29: #{attention_forward.1} parent=11 // pred_check
        %p240 = pneg %p145
      $region30: #{attention_forward.1} parent=11 // pred_check_branch
        %242 = sbr.rel (%p240) target = $region32
      $region31: #{attention_forward.1} parent=11 // pred_region
        _
      $region32: #{attention_forward.1} parent=11 // pred_fallthru
        _
      // Predicated region
      $region33: #{attention_forward.1} parent=11 // pred_check
        %p243 = pneg %p166
      $region34: #{attention_forward.1} parent=11 // pred_check_branch
        %245 = sbr.rel (%p243) target = $region36
      $region35: #{attention_forward.1} parent=11 // pred_region
        _
      $region36: #{attention_forward.1} parent=11 // pred_fallthru
        _
      // Predicated region
      $region37: #{attention_forward.1} parent=11 // pred_check
        %p246 = pneg %p187
      $region38: #{attention_forward.1} parent=11 // pred_check_branch
        %248 = sbr.rel (%p246) target = $region40
      $region39: #{attention_forward.1} parent=11 // pred_region
        _
      $region40: #{attention_forward.1} parent=11 // pred_fallthru
        _
    $region12: #{attention_forward.1} parent=5 // pred_fallthru
      _
    %p249 = scmp.lt.s32.totalorder %s14, 2
    // Predicated region
    $region41: #{attention_forward.1} parent=5 // pred_check
      %p250 = pneg %p249
    $region42: #{attention_forward.1} parent=5 // pred_check_branch
      %252 = sbr.rel (%p250) target = $region44
    $region43: #{attention_forward.1} parent=5 // pred_region
      // Predicated region
      $region45: #{attention_forward.1} parent=43 // pred_check
        %p253 = pneg %p34
      $region46: #{attention_forward.1} parent=43 // pred_check_branch
        %255 = sbr.rel (%p253) target = $region48
      $region47: #{attention_forward.1} parent=43 // pred_region
        %p256 = scmp.lt.s32.totalorder %s14, 1
        %s257 = scalar_select %p256, %s14, 1
        %s258 = smul.addr %s257, 16
        %s259 = smul.addr %s258, 8
        %s260 = scalar_lea.vmem %s0, %s259
      $region48: #{attention_forward.1} parent=43 // pred_fallthru
        _
    $region44: #{attention_forward.1} parent=5 // pred_fallthru
      _
    %p261 = scmp.le.s32.totalorder 1, %s14
    %p262 = scmp.lt.s32.totalorder %s14, 3
    %p263 = pnand %p261, %p262
    %p264 = pneg %p263
    // Predicated region
    $region49: #{attention_forward.1} parent=5 // pred_check
      _
    $region50: #{attention_forward.1} parent=5 // pred_check_branch
      %266 = sbr.rel (%p263) target = $region52
    $region51: #{attention_forward.1} parent=5 // pred_region
      %s267 = ssub.s32 %s14, 1
      %p268 = scmp.lt.s32.totalorder %s19, 1
      %s269 = scalar_select %p268, %s19, 1
      %s270 = smul.addr %s269, 16
      %s271 = smul.addr %s270, 8
      %s272 = scalar_lea.vmem %s0, %s271
      %p273 = pneg %p40
      %p274 = pneg %p37
      %p275 = pneg %p61
      %p276 = pneg %p58
      %p277 = pneg %p82
      %p278 = pneg %p79
      %p279 = pneg %p103
      %p280 = pneg %p100
      %p281 = pneg %p124
      %p282 = pneg %p121
      %p283 = pneg %p145
      %p284 = pneg %p142
      %p285 = pneg %p166
      %p286 = pneg %p163
      %p287 = pneg %p187
      %p288 = pneg %p184
      %p289 = pneg %p213
      %p290 = pneg %p210
      %p291 = scmp.lt.s32.totalorder %s19, 1
      %s292 = scalar_select %p291, %s19, 1
      %s293 = smul.addr %s292, 16
      %s294 = smul.addr %s293, 8
      %s295 = scalar_lea.vmem %s8, %s294
      %p296 = scmp.lt.s32.totalorder %s19, 1
      %s297 = scalar_select %p296, %s19, 1
      %s298 = smul.addr %s297, 16
      %s299 = smul.addr %s298, 8
      %s300 = scalar_lea.vmem %s0, %s299
      %p301 = scmp.lt.s32.totalorder %s19, 1
      %s302 = scalar_select %p301, %s19, 1
      %s303 = smul.addr %s302, 16
      %s304 = smul.addr %s303, 8
      %s305 = scalar_lea.vmem %s8, %s304
      %v307 = vld [vmem:[%s300] sm:$0xff]
      %v308 = vld [vmem:[%s300 + $0x8] sm:$0xff]
      %v309 = vld [vmem:[%s300 + $0x10] sm:$0xff]
      %v310 = vld [vmem:[%s300 + $0x18] sm:$0xff]
      %v311 = vld [vmem:[%s300 + $0x20] sm:$0xff]
      %v312 = vld [vmem:[%s300 + $0x28] sm:$0xff]
      %v313 = vld [vmem:[%s300 + $0x30] sm:$0xff]
      %v314 = vld [vmem:[%s300 + $0x38] sm:$0xff]
      %v315 = vld [vmem:[%s300 + $0x40] sm:$0xff]
      %v316 = vld [vmem:[%s300 + $0x48] sm:$0xff]
      %v317 = vld [vmem:[%s300 + $0x50] sm:$0xff]
      %v318 = vld [vmem:[%s300 + $0x58] sm:$0xff]
      %v319 = vld [vmem:[%s300 + $0x60] sm:$0xff]
      %v320 = vld [vmem:[%s300 + $0x68] sm:$0xff]
      %v321 = vld [vmem:[%s300 + $0x70] sm:$0xff]
      %v322 = vld [vmem:[%s300 + $0x78] sm:$0xff]
      %v323 = vld [vmem:[%s3] sm:$0xff]
      %v324 = vld [vmem:[%s3 + $0x8] sm:$0xff]
      %v325 = vld [vmem:[%s3 + $0x10] sm:$0xff]
      %v326 = vld [vmem:[%s3 + $0x18] sm:$0xff]
      %v327 = vld [vmem:[%s3 + $0x20] sm:$0xff]
      %v328 = vld [vmem:[%s3 + $0x28] sm:$0xff]
      %v329 = vld [vmem:[%s3 + $0x30] sm:$0xff]
      %v330 = vld [vmem:[%s3 + $0x38] sm:$0xff]
      %v331 = vld [vmem:[%s3 + $0x40] sm:$0xff]
      %v332 = vld [vmem:[%s3 + $0x48] sm:$0xff]
      %v333 = vld [vmem:[%s3 + $0x50] sm:$0xff]
      %v334 = vld [vmem:[%s3 + $0x58] sm:$0xff]
      %v335 = vld [vmem:[%s3 + $0x60] sm:$0xff]
      %v336 = vld [vmem:[%s3 + $0x68] sm:$0xff]
      %v337 = vld [vmem:[%s3 + $0x70] sm:$0xff]
      %v338 = vld [vmem:[%s3 + $0x78] sm:$0xff]
      %vm339 = vcmask 523264
      %v340 = vsel %vm339, %v307, 0.0
      %341 = vadd.xlane.f32.xlu0 %v340
      %v342 = vpop.xlane.xlu0 %341
      %v343 = vsel %vm339, %v308, 0.0
      %344 = vadd.xlane.f32.xlu0 %v343
      %v345 = vpop.xlane.xlu0 %344
      %v346 = vsel %vm339, %v309, 0.0
      %347 = vadd.xlane.f32.xlu0 %v346
      %v348 = vpop.xlane.xlu0 %347
      %v349 = vsel %vm339, %v310, 0.0
      %350 = vadd.xlane.f32.xlu0 %v349
      %v351 = vpop.xlane.xlu0 %350
      %v352 = vsel %vm339, %v311, 0.0
      %353 = vadd.xlane.f32.xlu0 %v352
      %v354 = vpop.xlane.xlu0 %353
      %v355 = vsel %vm339, %v312, 0.0
      %356 = vadd.xlane.f32.xlu0 %v355
      %v357 = vpop.xlane.xlu0 %356
      %v358 = vsel %vm339, %v313, 0.0
      %359 = vadd.xlane.f32.xlu0 %v358
      %v360 = vpop.xlane.xlu0 %359
      %v361 = vsel %vm339, %v314, 0.0
      %362 = vadd.xlane.f32.xlu0 %v361
      %v363 = vpop.xlane.xlu0 %362
      %v364 = vsel %vm339, %v315, 0.0
      %365 = vadd.xlane.f32.xlu0 %v364
      %v366 = vpop.xlane.xlu0 %365
      %v367 = vsel %vm339, %v316, 0.0
      %368 = vadd.xlane.f32.xlu0 %v367
      %v369 = vpop.xlane.xlu0 %368
      %v370 = vsel %vm339, %v317, 0.0
      %371 = vadd.xlane.f32.xlu0 %v370
      %v372 = vpop.xlane.xlu0 %371
      %v373 = vsel %vm339, %v318, 0.0
      %374 = vadd.xlane.f32.xlu0 %v373
      %v375 = vpop.xlane.xlu0 %374
      %v376 = vsel %vm339, %v319, 0.0
      %377 = vadd.xlane.f32.xlu0 %v376
      %v378 = vpop.xlane.xlu0 %377
      %v379 = vsel %vm339, %v320, 0.0
      %380 = vadd.xlane.f32.xlu0 %v379
      %v381 = vpop.xlane.xlu0 %380
      %v382 = vsel %vm339, %v321, 0.0
      %383 = vadd.xlane.f32.xlu0 %v382
      %v384 = vpop.xlane.xlu0 %383
      %v385 = vsel %vm339, %v322, 0.0
      %386 = vadd.xlane.f32.xlu0 %v385
      %v387 = vpop.xlane.xlu0 %386
      %388 = vmatpush.msra.mxu0 %v387
      %389 = vmatpush.msra.mxu0 %v384
      %390 = vmatpush.msra.mxu0 %v381
      %391 = vmatpush.msra.mxu0 %v378
      %392 = vmatpush.msra.mxu0 %v375
      %393 = vmatpush.msra.mxu0 %v372
      %394 = vmatpush.msra.mxu0 %v369
      %395 = vmatpush.msra.mxu0 %v366
      %396 = vmatpush.msra.mxu0 %v363
      %397 = vmatpush.msra.mxu0 %v360
      %398 = vmatpush.msra.mxu0 %v357
      %399 = vmatpush.msra.mxu0 %v354
      %400 = vmatpush.msra.mxu0 %v351
      %401 = vmatpush.msra.mxu0 %v348
      %402 = vmatpush.msra.mxu0 %v345
      %403 = vmatpush.msra.mxu0 %v342
      %404 = vmatmul.f32.gmra.mxu0 %v323
      %v405 = vpop.f32.mrf.mxu0
      %v406 = vadd.f32 0.0, %v405
      %407 = vmatmul.f32.gmra.mxu0 %v324
      %v408 = vpop.f32.mrf.mxu0
      %v409 = vadd.f32 0.0, %v408
      %410 = vmatmul.f32.gmra.mxu0 %v325
      %v411 = vpop.f32.mrf.mxu0
      %v412 = vadd.f32 0.0, %v411
      %413 = vmatmul.f32.gmra.mxu0 %v326
      %v414 = vpop.f32.mrf.mxu0
      %v415 = vadd.f32 0.0, %v414
      %416 = vmatmul.f32.gmra.mxu0 %v327
      %v417 = vpop.f32.mrf.mxu0
      %v418 = vadd.f32 0.0, %v417
      %419 = vmatmul.f32.gmra.mxu0 %v328
      %v420 = vpop.f32.mrf.mxu0
      %v421 = vadd.f32 0.0, %v420
      %422 = vmatmul.f32.gmra.mxu0 %v329
      %v423 = vpop.f32.mrf.mxu0
      %v424 = vadd.f32 0.0, %v423
      %425 = vmatmul.f32.gmra.mxu0 %v330
      %v426 = vpop.f32.mrf.mxu0
      %v427 = vadd.f32 0.0, %v426
      %428 = vmatmul.f32.gmra.mxu0 %v331
      %v429 = vpop.f32.mrf.mxu0
      %v430 = vadd.f32 0.0, %v429
      %431 = vmatmul.f32.gmra.mxu0 %v332
      %v432 = vpop.f32.mrf.mxu0
      %v433 = vadd.f32 0.0, %v432
      %434 = vmatmul.f32.gmra.mxu0 %v333
      %v435 = vpop.f32.mrf.mxu0
      %v436 = vadd.f32 0.0, %v435
      %437 = vmatmul.f32.gmra.mxu0 %v334
      %v438 = vpop.f32.mrf.mxu0
      %v439 = vadd.f32 0.0, %v438
      %440 = vmatmul.f32.gmra.mxu0 %v335
      %v441 = vpop.f32.mrf.mxu0
      %v442 = vadd.f32 0.0, %v441
      %443 = vmatmul.f32.gmra.mxu0 %v336
      %v444 = vpop.f32.mrf.mxu0
      %v445 = vadd.f32 0.0, %v444
      %446 = vmatmul.f32.gmra.mxu0 %v337
      %v447 = vpop.f32.mrf.mxu0
      %v448 = vadd.f32 0.0, %v447
      %449 = vmatmul.f32.gmra.mxu0 %v338
      %v450 = vpop.f32.mrf.mxu0
      %v451 = vadd.f32 0.0, %v450
      %452 = vdwg.mxu0
      %v453 = vmul.f32 %v406, 0.00390625
      %v454 = vmul.f32 %v409, 0.00390625
      %v455 = vmul.f32 %v412, 0.00390625
      %v456 = vmul.f32 %v415, 0.00390625
      %v457 = vmul.f32 %v418, 0.00390625
      %v458 = vmul.f32 %v421, 0.00390625
      %v459 = vmul.f32 %v424, 0.00390625
      %v460 = vmul.f32 %v427, 0.00390625
      %v461 = vmul.f32 %v430, 0.00390625
      %v462 = vmul.f32 %v433, 0.00390625
      %v463 = vmul.f32 %v436, 0.00390625
      %v464 = vmul.f32 %v439, 0.00390625
      %v465 = vmul.f32 %v442, 0.00390625
      %v466 = vmul.f32 %v445, 0.00390625
      %v467 = vmul.f32 %v448, 0.00390625
      %v468 = vmul.f32 %v451, 0.00390625
      %470 = vset.pattern.permute.xlu0 0
      %471 = vperm.xlu0 %470, %v453
      %v472 = vpop.permute.xlu0 %471
      %475 = vset.pattern.permute.xlu0 0
      %476 = vperm.xlu0 %475, %v454
      %v477 = vpop.permute.xlu0 %476
      %480 = vset.pattern.permute.xlu0 0
      %481 = vperm.xlu0 %480, %v455
      %v482 = vpop.permute.xlu0 %481
      %485 = vset.pattern.permute.xlu0 0
      %486 = vperm.xlu0 %485, %v456
      %v487 = vpop.permute.xlu0 %486
      %490 = vset.pattern.permute.xlu0 0
      %491 = vperm.xlu0 %490, %v457
      %v492 = vpop.permute.xlu0 %491
      %495 = vset.pattern.permute.xlu0 0
      %496 = vperm.xlu0 %495, %v458
      %v497 = vpop.permute.xlu0 %496
      %500 = vset.pattern.permute.xlu0 0
      %501 = vperm.xlu0 %500, %v459
      %v502 = vpop.permute.xlu0 %501
      %505 = vset.pattern.permute.xlu0 0
      %506 = vperm.xlu0 %505, %v460
      %v507 = vpop.permute.xlu0 %506
      %510 = vset.pattern.permute.xlu0 0
      %511 = vperm.xlu0 %510, %v461
      %v512 = vpop.permute.xlu0 %511
      %515 = vset.pattern.permute.xlu0 0
      %516 = vperm.xlu0 %515, %v462
      %v517 = vpop.permute.xlu0 %516
      %520 = vset.pattern.permute.xlu0 0
      %521 = vperm.xlu0 %520, %v463
      %v522 = vpop.permute.xlu0 %521
      %525 = vset.pattern.permute.xlu0 0
      %526 = vperm.xlu0 %525, %v464
      %v527 = vpop.permute.xlu0 %526
      %530 = vset.pattern.permute.xlu0 0
      %531 = vperm.xlu0 %530, %v465
      %v532 = vpop.permute.xlu0 %531
      %535 = vset.pattern.permute.xlu0 0
      %536 = vperm.xlu0 %535, %v466
      %v537 = vpop.permute.xlu0 %536
      %540 = vset.pattern.permute.xlu0 0
      %541 = vperm.xlu0 %540, %v467
      %v542 = vpop.permute.xlu0 %541
      %545 = vset.pattern.permute.xlu0 0
      %546 = vperm.xlu0 %545, %v468
      %v547 = vpop.permute.xlu0 %546
      %v549 = vsub.f32 %v307, %v472
      %v550 = vsub.f32 %v308, %v477
      %v551 = vsub.f32 %v309, %v482
      %v552 = vsub.f32 %v310, %v487
      %v553 = vsub.f32 %v311, %v492
      %v554 = vsub.f32 %v312, %v497
      %v555 = vsub.f32 %v313, %v502
      %v556 = vsub.f32 %v314, %v507
      %v557 = vsub.f32 %v315, %v512
      %v558 = vsub.f32 %v316, %v517
      %v559 = vsub.f32 %v317, %v522
      %v560 = vsub.f32 %v318, %v527
      %v561 = vsub.f32 %v319, %v532
      %v562 = vsub.f32 %v320, %v537
      %v563 = vsub.f32 %v321, %v542
      %v564 = vsub.f32 %v322, %v547
      %v565 = vmul.f32 %v549, %v549
      %v566 = vmul.f32 %v550, %v550
      %v567 = vmul.f32 %v551, %v551
      %v568 = vmul.f32 %v552, %v552
      %v569 = vmul.f32 %v553, %v553
      %v570 = vmul.f32 %v554, %v554
      %v571 = vmul.f32 %v555, %v555
      %v572 = vmul.f32 %v556, %v556
      %v573 = vmul.f32 %v557, %v557
      %v574 = vmul.f32 %v558, %v558
      %v575 = vmul.f32 %v559, %v559
      %v576 = vmul.f32 %v560, %v560
      %v577 = vmul.f32 %v561, %v561
      %v578 = vmul.f32 %v562, %v562
      %v579 = vmul.f32 %v563, %v563
      %v580 = vmul.f32 %v564, %v564
      %v581 = vsel %vm339, %v565, 0.0
      %582 = vadd.xlane.f32.xlu0 %v581
      %v583 = vpop.xlane.xlu0 %582
      %v584 = vsel %vm339, %v566, 0.0
      %585 = vadd.xlane.f32.xlu0 %v584
      %v586 = vpop.xlane.xlu0 %585
      %v587 = vsel %vm339, %v567, 0.0
      %588 = vadd.xlane.f32.xlu0 %v587
      %v589 = vpop.xlane.xlu0 %588
      %v590 = vsel %vm339, %v568, 0.0
      %591 = vadd.xlane.f32.xlu0 %v590
      %v592 = vpop.xlane.xlu0 %591
      %v593 = vsel %vm339, %v569, 0.0
      %594 = vadd.xlane.f32.xlu0 %v593
      %v595 = vpop.xlane.xlu0 %594
      %v596 = vsel %vm339, %v570, 0.0
      %597 = vadd.xlane.f32.xlu0 %v596
      %v598 = vpop.xlane.xlu0 %597
      %v599 = vsel %vm339, %v571, 0.0
      %600 = vadd.xlane.f32.xlu0 %v599
      %v601 = vpop.xlane.xlu0 %600
      %v602 = vsel %vm339, %v572, 0.0
      %603 = vadd.xlane.f32.xlu0 %v602
      %v604 = vpop.xlane.xlu0 %603
      %v605 = vsel %vm339, %v573, 0.0
      %606 = vadd.xlane.f32.xlu0 %v605
      %v607 = vpop.xlane.xlu0 %606
      %v608 = vsel %vm339, %v574, 0.0
      %609 = vadd.xlane.f32.xlu0 %v608
      %v610 = vpop.xlane.xlu0 %609
      %v611 = vsel %vm339, %v575, 0.0
      %612 = vadd.xlane.f32.xlu0 %v611
      %v613 = vpop.xlane.xlu0 %612
      %v614 = vsel %vm339, %v576, 0.0
      %615 = vadd.xlane.f32.xlu0 %v614
      %v616 = vpop.xlane.xlu0 %615
      %v617 = vsel %vm339, %v577, 0.0
      %618 = vadd.xlane.f32.xlu0 %v617
      %v619 = vpop.xlane.xlu0 %618
      %v620 = vsel %vm339, %v578, 0.0
      %621 = vadd.xlane.f32.xlu0 %v620
      %v622 = vpop.xlane.xlu0 %621
      %v623 = vsel %vm339, %v579, 0.0
      %624 = vadd.xlane.f32.xlu0 %v623
      %v625 = vpop.xlane.xlu0 %624
      %v626 = vsel %vm339, %v580, 0.0
      %627 = vadd.xlane.f32.xlu0 %v626
      %v628 = vpop.xlane.xlu0 %627
      %629 = vmatpush.msra.mxu0 %v628
      %630 = vmatpush.msra.mxu0 %v625
      %631 = vmatpush.msra.mxu0 %v622
      %632 = vmatpush.msra.mxu0 %v619
      %633 = vmatpush.msra.mxu0 %v616
      %634 = vmatpush.msra.mxu0 %v613
      %635 = vmatpush.msra.mxu0 %v610
      %636 = vmatpush.msra.mxu0 %v607
      %637 = vmatpush.msra.mxu0 %v604
      %638 = vmatpush.msra.mxu0 %v601
      %639 = vmatpush.msra.mxu0 %v598
      %640 = vmatpush.msra.mxu0 %v595
      %641 = vmatpush.msra.mxu0 %v592
      %642 = vmatpush.msra.mxu0 %v589
      %643 = vmatpush.msra.mxu0 %v586
      %644 = vmatpush.msra.mxu0 %v583
      %645 = vmatmul.f32.gmra.mxu0 %v323
      %v646 = vpop.f32.mrf.mxu0
      %v647 = vadd.f32 0.0, %v646
      %648 = vmatmul.f32.gmra.mxu0 %v324
      %v649 = vpop.f32.mrf.mxu0
      %v650 = vadd.f32 0.0, %v649
      %651 = vmatmul.f32.gmra.mxu0 %v325
      %v652 = vpop.f32.mrf.mxu0
      %v653 = vadd.f32 0.0, %v652
      %654 = vmatmul.f32.gmra.mxu0 %v326
      %v655 = vpop.f32.mrf.mxu0
      %v656 = vadd.f32 0.0, %v655
      %657 = vmatmul.f32.gmra.mxu0 %v327
      %v658 = vpop.f32.mrf.mxu0
      %v659 = vadd.f32 0.0, %v658
      %660 = vmatmul.f32.gmra.mxu0 %v328
      %v661 = vpop.f32.mrf.mxu0
      %v662 = vadd.f32 0.0, %v661
      %663 = vmatmul.f32.gmra.mxu0 %v329
      %v664 = vpop.f32.mrf.mxu0
      %v665 = vadd.f32 0.0, %v664
      %666 = vmatmul.f32.gmra.mxu0 %v330
      %v667 = vpop.f32.mrf.mxu0
      %v668 = vadd.f32 0.0, %v667
      %669 = vmatmul.f32.gmra.mxu0 %v331
      %v670 = vpop.f32.mrf.mxu0
      %v671 = vadd.f32 0.0, %v670
      %672 = vmatmul.f32.gmra.mxu0 %v332
      %v673 = vpop.f32.mrf.mxu0
      %v674 = vadd.f32 0.0, %v673
      %675 = vmatmul.f32.gmra.mxu0 %v333
      %v676 = vpop.f32.mrf.mxu0
      %v677 = vadd.f32 0.0, %v676
      %678 = vmatmul.f32.gmra.mxu0 %v334
      %v679 = vpop.f32.mrf.mxu0
      %v680 = vadd.f32 0.0, %v679
      %681 = vmatmul.f32.gmra.mxu0 %v335
      %v682 = vpop.f32.mrf.mxu0
      %v683 = vadd.f32 0.0, %v682
      %684 = vmatmul.f32.gmra.mxu0 %v336
      %v685 = vpop.f32.mrf.mxu0
      %v686 = vadd.f32 0.0, %v685
      %687 = vmatmul.f32.gmra.mxu0 %v337
      %v688 = vpop.f32.mrf.mxu0
      %v689 = vadd.f32 0.0, %v688
      %690 = vmatmul.f32.gmra.mxu0 %v338
      %v691 = vpop.f32.mrf.mxu0
      %v692 = vadd.f32 0.0, %v691
      %693 = vdwg.mxu0
      %v694 = vmul.f32 %v647, 0.00390625
      %v695 = vmul.f32 %v650, 0.00390625
      %v696 = vmul.f32 %v653, 0.00390625
      %v697 = vmul.f32 %v656, 0.00390625
      %v698 = vmul.f32 %v659, 0.00390625
      %v699 = vmul.f32 %v662, 0.00390625
      %v700 = vmul.f32 %v665, 0.00390625
      %v701 = vmul.f32 %v668, 0.00390625
      %v702 = vmul.f32 %v671, 0.00390625
      %v703 = vmul.f32 %v674, 0.00390625
      %v704 = vmul.f32 %v677, 0.00390625
      %v705 = vmul.f32 %v680, 0.00390625
      %v706 = vmul.f32 %v683, 0.00390625
      %v707 = vmul.f32 %v686, 0.00390625
      %v708 = vmul.f32 %v689, 0.00390625
      %v709 = vmul.f32 %v692, 0.00390625
      %v710 = vadd.f32 %v694, 1e-05
      %v711 = vadd.f32 %v695, 1e-05
      %v712 = vadd.f32 %v696, 1e-05
      %v713 = vadd.f32 %v697, 1e-05
      %v714 = vadd.f32 %v698, 1e-05
      %v715 = vadd.f32 %v699, 1e-05
      %v716 = vadd.f32 %v700, 1e-05
      %v717 = vadd.f32 %v701, 1e-05
      %v718 = vadd.f32 %v702, 1e-05
      %v719 = vadd.f32 %v703, 1e-05
      %v720 = vadd.f32 %v704, 1e-05
      %v721 = vadd.f32 %v705, 1e-05
      %v722 = vadd.f32 %v706, 1e-05
      %v723 = vadd.f32 %v707, 1e-05
      %v724 = vadd.f32 %v708, 1e-05
      %v725 = vadd.f32 %v709, 1e-05
      %v726 = vrsqrt.pop %v710
      %v727 = vmul.f32 %v726, %v710
      %v728 = vmul.f32 %v727, %v726
      %v729 = vmul.f32 0.5, %v728
      %v730 = vsub.f32 1.5, %v729
      %v731 = vmul.f32 %v726, %v730
      %vm732 = vweird.f32 %v710
      %vm733 = vweird.f32 %v726
      %vm734 = vmor %vm732, %vm733
      %v735 = vsel %vm734, %v726, %v731
      %v736 = vrsqrt.pop %v711
      %v737 = vmul.f32 %v736, %v711
      %v738 = vmul.f32 %v737, %v736
      %v739 = vmul.f32 0.5, %v738
      %v740 = vsub.f32 1.5, %v739
      %v741 = vmul.f32 %v736, %v740
      %vm742 = vweird.f32 %v711
      %vm743 = vweird.f32 %v736
      %vm744 = vmor %vm742, %vm743
      %v745 = vsel %vm744, %v736, %v741
      %v746 = vrsqrt.pop %v712
      %v747 = vmul.f32 %v746, %v712
      %v748 = vmul.f32 %v747, %v746
      %v749 = vmul.f32 0.5, %v748
      %v750 = vsub.f32 1.5, %v749
      %v751 = vmul.f32 %v746, %v750
      %vm752 = vweird.f32 %v712
      %vm753 = vweird.f32 %v746
      %vm754 = vmor %vm752, %vm753
      %v755 = vsel %vm754, %v746, %v751
      %v756 = vrsqrt.pop %v713
      %v757 = vmul.f32 %v756, %v713
      %v758 = vmul.f32 %v757, %v756
      %v759 = vmul.f32 0.5, %v758
      %v760 = vsub.f32 1.5, %v759
      %v761 = vmul.f32 %v756, %v760
      %vm762 = vweird.f32 %v713
      %vm763 = vweird.f32 %v756
      %vm764 = vmor %vm762, %vm763
      %v765 = vsel %vm764, %v756, %v761
      %v766 = vrsqrt.pop %v714
      %v767 = vmul.f32 %v766, %v714
      %v768 = vmul.f32 %v767, %v766
      %v769 = vmul.f32 0.5, %v768
      %v770 = vsub.f32 1.5, %v769
      %v771 = vmul.f32 %v766, %v770
      %vm772 = vweird.f32 %v714
      %vm773 = vweird.f32 %v766
      %vm774 = vmor %vm772, %vm773
      %v775 = vsel %vm774, %v766, %v771
      %v776 = vrsqrt.pop %v715
      %v777 = vmul.f32 %v776, %v715
      %v778 = vmul.f32 %v777, %v776
      %v779 = vmul.f32 0.5, %v778
      %v780 = vsub.f32 1.5, %v779
      %v781 = vmul.f32 %v776, %v780
      %vm782 = vweird.f32 %v715
      %vm783 = vweird.f32 %v776
      %vm784 = vmor %vm782, %vm783
      %v785 = vsel %vm784, %v776, %v781
      %v786 = vrsqrt.pop %v716
      %v787 = vmul.f32 %v786, %v716
      %v788 = vmul.f32 %v787, %v786
      %v789 = vmul.f32 0.5, %v788
      %v790 = vsub.f32 1.5, %v789
      %v791 = vmul.f32 %v786, %v790
      %vm792 = vweird.f32 %v716
      %vm793 = vweird.f32 %v786
      %vm794 = vmor %vm792, %vm793
      %v795 = vsel %vm794, %v786, %v791
      %v796 = vrsqrt.pop %v717
      %v797 = vmul.f32 %v796, %v717
      %v798 = vmul.f32 %v797, %v796
      %v799 = vmul.f32 0.5, %v798
      %v800 = vsub.f32 1.5, %v799
      %v801 = vmul.f32 %v796, %v800
      %vm802 = vweird.f32 %v717
      %vm803 = vweird.f32 %v796
      %vm804 = vmor %vm802, %vm803
      %v805 = vsel %vm804, %v796, %v801
      %v806 = vrsqrt.pop %v718
      %v807 = vmul.f32 %v806, %v718
      %v808 = vmul.f32 %v807, %v806
      %v809 = vmul.f32 0.5, %v808
      %v810 = vsub.f32 1.5, %v809
      %v811 = vmul.f32 %v806, %v810
      %vm812 = vweird.f32 %v718
      %vm813 = vweird.f32 %v806
      %vm814 = vmor %vm812, %vm813
      %v815 = vsel %vm814, %v806, %v811
      %v816 = vrsqrt.pop %v719
      %v817 = vmul.f32 %v816, %v719
      %v818 = vmul.f32 %v817, %v816
      %v819 = vmul.f32 0.5, %v818
      %v820 = vsub.f32 1.5, %v819
      %v821 = vmul.f32 %v816, %v820
      %vm822 = vweird.f32 %v719
      %vm823 = vweird.f32 %v816
      %vm824 = vmor %vm822, %vm823
      %v825 = vsel %vm824, %v816, %v821
      %v826 = vrsqrt.pop %v720
      %v827 = vmul.f32 %v826, %v720
      %v828 = vmul.f32 %v827, %v826
      %v829 = vmul.f32 0.5, %v828
      %v830 = vsub.f32 1.5, %v829
      %v831 = vmul.f32 %v826, %v830
      %vm832 = vweird.f32 %v720
      %vm833 = vweird.f32 %v826
      %vm834 = vmor %vm832, %vm833
      %v835 = vsel %vm834, %v826, %v831
      %v836 = vrsqrt.pop %v721
      %v837 = vmul.f32 %v836, %v721
      %v838 = vmul.f32 %v837, %v836
      %v839 = vmul.f32 0.5, %v838
      %v840 = vsub.f32 1.5, %v839
      %v841 = vmul.f32 %v836, %v840
      %vm842 = vweird.f32 %v721
      %vm843 = vweird.f32 %v836
      %vm844 = vmor %vm842, %vm843
      %v845 = vsel %vm844, %v836, %v841
      %v846 = vrsqrt.pop %v722
      %v847 = vmul.f32 %v846, %v722
      %v848 = vmul.f32 %v847, %v846
      %v849 = vmul.f32 0.5, %v848
      %v850 = vsub.f32 1.5, %v849
      %v851 = vmul.f32 %v846, %v850
      %vm852 = vweird.f32 %v722
      %vm853 = vweird.f32 %v846
      %vm854 = vmor %vm852, %vm853
      %v855 = vsel %vm854, %v846, %v851
      %v856 = vrsqrt.pop %v723
      %v857 = vmul.f32 %v856, %v723
      %v858 = vmul.f32 %v857, %v856
      %v859 = vmul.f32 0.5, %v858
      %v860 = vsub.f32 1.5, %v859
      %v861 = vmul.f32 %v856, %v860
      %vm862 = vweird.f32 %v723
      %vm863 = vweird.f32 %v856
      %vm864 = vmor %vm862, %vm863
      %v865 = vsel %vm864, %v856, %v861
      %v866 = vrsqrt.pop %v724
      %v867 = vmul.f32 %v866, %v724
      %v868 = vmul.f32 %v867, %v866
      %v869 = vmul.f32 0.5, %v868
      %v870 = vsub.f32 1.5, %v869
      %v871 = vmul.f32 %v866, %v870
      %vm872 = vweird.f32 %v724
      %vm873 = vweird.f32 %v866
      %vm874 = vmor %vm872, %vm873
      %v875 = vsel %vm874, %v866, %v871
      %v876 = vrsqrt.pop %v725
      %v877 = vmul.f32 %v876, %v725
      %v878 = vmul.f32 %v877, %v876
      %v879 = vmul.f32 0.5, %v878
      %v880 = vsub.f32 1.5, %v879
      %v881 = vmul.f32 %v876, %v880
      %vm882 = vweird.f32 %v725
      %vm883 = vweird.f32 %v876
      %vm884 = vmor %vm882, %vm883
      %v885 = vsel %vm884, %v876, %v881
      %v886 = vld [vmem:[%s1] sm:$0xff]
      %v887 = vld [vmem:[%s1 + $0x8] sm:$0xff]
      %v888 = vld [vmem:[%s1 + $0x10] sm:$0xff]
      %v889 = vld [vmem:[%s1 + $0x18] sm:$0xff]
      %v890 = vld [vmem:[%s1 + $0x20] sm:$0xff]
      %v891 = vld [vmem:[%s1 + $0x28] sm:$0xff]
      %v892 = vld [vmem:[%s1 + $0x30] sm:$0xff]
      %v893 = vld [vmem:[%s1 + $0x38] sm:$0xff]
      %v894 = vld [vmem:[%s1 + $0x40] sm:$0xff]
      %v895 = vld [vmem:[%s1 + $0x48] sm:$0xff]
      %v896 = vld [vmem:[%s1 + $0x50] sm:$0xff]
      %v897 = vld [vmem:[%s1 + $0x58] sm:$0xff]
      %v898 = vld [vmem:[%s1 + $0x60] sm:$0xff]
      %v899 = vld [vmem:[%s1 + $0x68] sm:$0xff]
      %v900 = vld [vmem:[%s1 + $0x70] sm:$0xff]
      %v901 = vld [vmem:[%s1 + $0x78] sm:$0xff]
      %v902 = vmul.f32 %v735, %v886
      %v903 = vmul.f32 %v745, %v887
      %v904 = vmul.f32 %v755, %v888
      %v905 = vmul.f32 %v765, %v889
      %v906 = vmul.f32 %v775, %v890
      %v907 = vmul.f32 %v785, %v891
      %v908 = vmul.f32 %v795, %v892
      %v909 = vmul.f32 %v805, %v893
      %v910 = vmul.f32 %v815, %v894
      %v911 = vmul.f32 %v825, %v895
      %v912 = vmul.f32 %v835, %v896
      %v913 = vmul.f32 %v845, %v897
      %v914 = vmul.f32 %v855, %v898
      %v915 = vmul.f32 %v865, %v899
      %v916 = vmul.f32 %v875, %v900
      %v917 = vmul.f32 %v885, %v901
      %919 = vset.pattern.permute.xlu0 0
      %920 = vperm.xlu0 %919, %v902
      %v921 = vpop.permute.xlu0 %920
      %924 = vset.pattern.permute.xlu0 0
      %925 = vperm.xlu0 %924, %v903
      %v926 = vpop.permute.xlu0 %925
      %929 = vset.pattern.permute.xlu0 0
      %930 = vperm.xlu0 %929, %v904
      %v931 = vpop.permute.xlu0 %930
      %934 = vset.pattern.permute.xlu0 0
      %935 = vperm.xlu0 %934, %v905
      %v936 = vpop.permute.xlu0 %935
      %939 = vset.pattern.permute.xlu0 0
      %940 = vperm.xlu0 %939, %v906
      %v941 = vpop.permute.xlu0 %940
      %944 = vset.pattern.permute.xlu0 0
      %945 = vperm.xlu0 %944, %v907
      %v946 = vpop.permute.xlu0 %945
      %949 = vset.pattern.permute.xlu0 0
      %950 = vperm.xlu0 %949, %v908
      %v951 = vpop.permute.xlu0 %950
      %954 = vset.pattern.permute.xlu0 0
      %955 = vperm.xlu0 %954, %v909
      %v956 = vpop.permute.xlu0 %955
      %959 = vset.pattern.permute.xlu0 0
      %960 = vperm.xlu0 %959, %v910
      %v961 = vpop.permute.xlu0 %960
      %964 = vset.pattern.permute.xlu0 0
      %965 = vperm.xlu0 %964, %v911
      %v966 = vpop.permute.xlu0 %965
      %969 = vset.pattern.permute.xlu0 0
      %970 = vperm.xlu0 %969, %v912
      %v971 = vpop.permute.xlu0 %970
      %974 = vset.pattern.permute.xlu0 0
      %975 = vperm.xlu0 %974, %v913
      %v976 = vpop.permute.xlu0 %975
      %979 = vset.pattern.permute.xlu0 0
      %980 = vperm.xlu0 %979, %v914
      %v981 = vpop.permute.xlu0 %980
      %984 = vset.pattern.permute.xlu0 0
      %985 = vperm.xlu0 %984, %v915
      %v986 = vpop.permute.xlu0 %985
      %989 = vset.pattern.permute.xlu0 0
      %990 = vperm.xlu0 %989, %v916
      %v991 = vpop.permute.xlu0 %990
      %994 = vset.pattern.permute.xlu0 0
      %995 = vperm.xlu0 %994, %v917
      %v996 = vpop.permute.xlu0 %995
      %v998 = vmul.f32 %v549, %v921
      %v999 = vmul.f32 %v550, %v926
      %v1000 = vmul.f32 %v551, %v931
      %v1001 = vmul.f32 %v552, %v936
      %v1002 = vmul.f32 %v553, %v941
      %v1003 = vmul.f32 %v554, %v946
      %v1004 = vmul.f32 %v555, %v951
      %v1005 = vmul.f32 %v556, %v956
      %v1006 = vmul.f32 %v557, %v961
      %v1007 = vmul.f32 %v558, %v966
      %v1008 = vmul.f32 %v559, %v971
      %v1009 = vmul.f32 %v560, %v976
      %v1010 = vmul.f32 %v561, %v981
      %v1011 = vmul.f32 %v562, %v986
      %v1012 = vmul.f32 %v563, %v991
      %v1013 = vmul.f32 %v564, %v996
      %v1014 = vld [vmem:[%s2] sm:$0xff]
      %v1015 = vld [vmem:[%s2 + $0x8] sm:$0xff]
      %v1016 = vld [vmem:[%s2 + $0x10] sm:$0xff]
      %v1017 = vld [vmem:[%s2 + $0x18] sm:$0xff]
      %v1018 = vld [vmem:[%s2 + $0x20] sm:$0xff]
      %v1019 = vld [vmem:[%s2 + $0x28] sm:$0xff]
      %v1020 = vld [vmem:[%s2 + $0x30] sm:$0xff]
      %v1021 = vld [vmem:[%s2 + $0x38] sm:$0xff]
      %v1022 = vld [vmem:[%s2 + $0x40] sm:$0xff]
      %v1023 = vld [vmem:[%s2 + $0x48] sm:$0xff]
      %v1024 = vld [vmem:[%s2 + $0x50] sm:$0xff]
      %v1025 = vld [vmem:[%s2 + $0x58] sm:$0xff]
      %v1026 = vld [vmem:[%s2 + $0x60] sm:$0xff]
      %v1027 = vld [vmem:[%s2 + $0x68] sm:$0xff]
      %v1028 = vld [vmem:[%s2 + $0x70] sm:$0xff]
      %v1029 = vld [vmem:[%s2 + $0x78] sm:$0xff]
      %1031 = vset.pattern.permute.xlu0 0
      %1032 = vperm.xlu0 %1031, %v1014
      %v1033 = vpop.permute.xlu0 %1032
      %1036 = vset.pattern.permute.xlu0 0
      %1037 = vperm.xlu0 %1036, %v1015
      %v1038 = vpop.permute.xlu0 %1037
      %1041 = vset.pattern.permute.xlu0 0
      %1042 = vperm.xlu0 %1041, %v1016
      %v1043 = vpop.permute.xlu0 %1042
      %1046 = vset.pattern.permute.xlu0 0
      %1047 = vperm.xlu0 %1046, %v1017
      %v1048 = vpop.permute.xlu0 %1047
      %1051 = vset.pattern.permute.xlu0 0
      %1052 = vperm.xlu0 %1051, %v1018
      %v1053 = vpop.permute.xlu0 %1052
      %1056 = vset.pattern.permute.xlu0 0
      %1057 = vperm.xlu0 %1056, %v1019
      %v1058 = vpop.permute.xlu0 %1057
      %1061 = vset.pattern.permute.xlu0 0
      %1062 = vperm.xlu0 %1061, %v1020
      %v1063 = vpop.permute.xlu0 %1062
      %1066 = vset.pattern.permute.xlu0 0
      %1067 = vperm.xlu0 %1066, %v1021
      %v1068 = vpop.permute.xlu0 %1067
      %1071 = vset.pattern.permute.xlu0 0
      %1072 = vperm.xlu0 %1071, %v1022
      %v1073 = vpop.permute.xlu0 %1072
      %1076 = vset.pattern.permute.xlu0 0
      %1077 = vperm.xlu0 %1076, %v1023
      %v1078 = vpop.permute.xlu0 %1077
      %1081 = vset.pattern.permute.xlu0 0
      %1082 = vperm.xlu0 %1081, %v1024
      %v1083 = vpop.permute.xlu0 %1082
      %1086 = vset.pattern.permute.xlu0 0
      %1087 = vperm.xlu0 %1086, %v1025
      %v1088 = vpop.permute.xlu0 %1087
      %1091 = vset.pattern.permute.xlu0 0
      %1092 = vperm.xlu0 %1091, %v1026
      %v1093 = vpop.permute.xlu0 %1092
      %1096 = vset.pattern.permute.xlu0 0
      %1097 = vperm.xlu0 %1096, %v1027
      %v1098 = vpop.permute.xlu0 %1097
      %1101 = vset.pattern.permute.xlu0 0
      %1102 = vperm.xlu0 %1101, %v1028
      %v1103 = vpop.permute.xlu0 %1102
      %1106 = vset.pattern.permute.xlu0 0
      %1107 = vperm.xlu0 %1106, %v1029
      %v1108 = vpop.permute.xlu0 %1107
      %v1110 = vadd.f32 %v998, %v1033
      %v1111 = vadd.f32 %v999, %v1038
      %v1112 = vadd.f32 %v1000, %v1043
      %v1113 = vadd.f32 %v1001, %v1048
      %v1114 = vadd.f32 %v1002, %v1053
      %v1115 = vadd.f32 %v1003, %v1058
      %v1116 = vadd.f32 %v1004, %v1063
      %v1117 = vadd.f32 %v1005, %v1068
      %v1118 = vadd.f32 %v1006, %v1073
      %v1119 = vadd.f32 %v1007, %v1078
      %v1120 = vadd.f32 %v1008, %v1083
      %v1121 = vadd.f32 %v1009, %v1088
      %v1122 = vadd.f32 %v1010, %v1093
      %v1123 = vadd.f32 %v1011, %v1098
      %v1124 = vadd.f32 %v1012, %v1103
      %v1125 = vadd.f32 %v1013, %v1108
      %v1126 = vld [vmem:[%s4] sm:$0xf]
      %v1127 = vld [vmem:[%s4 + $0x4] sm:$0xf]
      %v1128 = vld [vmem:[%s4 + $0x8] sm:$0xf]
      %v1129 = vld [vmem:[%s4 + $0xc] sm:$0xf]
      %v1130 = vld [vmem:[%s4 + $0x10] sm:$0xf]
      %v1131 = vld [vmem:[%s4 + $0x14] sm:$0xf]
      %v1132 = vld [vmem:[%s4 + $0x18] sm:$0xf]
      %v1133 = vld [vmem:[%s4 + $0x1c] sm:$0xf]
      %v1134 = vld [vmem:[%s4 + $0x20] sm:$0xf]
      %v1135 = vld [vmem:[%s4 + $0x24] sm:$0xf]
      %v1136 = vld [vmem:[%s4 + $0x28] sm:$0xf]
      %v1137 = vld [vmem:[%s4 + $0x2c] sm:$0xf]
      %v1138 = vld [vmem:[%s4 + $0x30] sm:$0xf]
      %v1139 = vld [vmem:[%s4 + $0x34] sm:$0xf]
      %v1140 = vld [vmem:[%s4 + $0x38] sm:$0xf]
      %v1141 = vld [vmem:[%s4 + $0x3c] sm:$0xf]
      %v1142 = vld [vmem:[%s4 + $0x40] sm:$0xf]
      %v1143 = vld [vmem:[%s4 + $0x44] sm:$0xf]
      %v1144 = vld [vmem:[%s4 + $0x48] sm:$0xf]
      %v1145 = vld [vmem:[%s4 + $0x4c] sm:$0xf]
      %v1146 = vld [vmem:[%s4 + $0x50] sm:$0xf]
      %v1147 = vld [vmem:[%s4 + $0x54] sm:$0xf]
      %v1148 = vld [vmem:[%s4 + $0x58] sm:$0xf]
      %v1149 = vld [vmem:[%s4 + $0x5c] sm:$0xf]
      %v1150 = vld [vmem:[%s4 + $0x60] sm:$0xf]
      %v1151 = vld [vmem:[%s4 + $0x64] sm:$0xf]
      %v1152 = vld [vmem:[%s4 + $0x68] sm:$0xf]
      %v1153 = vld [vmem:[%s4 + $0x6c] sm:$0xf]
      %v1154 = vld [vmem:[%s4 + $0x70] sm:$0xf]
      %v1155 = vld [vmem:[%s4 + $0x74] sm:$0xf]
      %v1156 = vld [vmem:[%s4 + $0x78] sm:$0xf]
      %v1157 = vld [vmem:[%s4 + $0x7c] sm:$0xf]
      %v1158 = vld [vmem:[%s4 + $0x80] sm:$0xf]
      %v1159 = vld [vmem:[%s4 + $0x84] sm:$0xf]
      %v1160 = vld [vmem:[%s4 + $0x88] sm:$0xf]
      %v1161 = vld [vmem:[%s4 + $0x8c] sm:$0xf]
      %v1162 = vld [vmem:[%s4 + $0x90] sm:$0xf]
      %v1163 = vld [vmem:[%s4 + $0x94] sm:$0xf]
      %v1164 = vld [vmem:[%s4 + $0x98] sm:$0xf]
      %v1165 = vld [vmem:[%s4 + $0x9c] sm:$0xf]
      %v1166 = vld [vmem:[%s4 + $0xa0] sm:$0xf]
      %v1167 = vld [vmem:[%s4 + $0xa4] sm:$0xf]
      %v1168 = vld [vmem:[%s4 + $0xa8] sm:$0xf]
      %v1169 = vld [vmem:[%s4 + $0xac] sm:$0xf]
      %v1170 = vld [vmem:[%s4 + $0xb0] sm:$0xf]
      %v1171 = vld [vmem:[%s4 + $0xb4] sm:$0xf]
      %v1172 = vld [vmem:[%s4 + $0xb8] sm:$0xf]
      %v1173 = vld [vmem:[%s4 + $0xbc] sm:$0xf]
      %v1174 = vpack.c.bf16 %v1111, %v1110
      %v1175 = vpack.c.bf16 %v1113, %v1112
      %v1176 = vpack.c.bf16 %v1115, %v1114
      %v1177 = vpack.c.bf16 %v1117, %v1116
      %v1178 = vpack.c.bf16 %v1119, %v1118
      %v1179 = vpack.c.bf16 %v1121, %v1120
      %v1180 = vpack.c.bf16 %v1123, %v1122
      %v1181 = vpack.c.bf16 %v1125, %v1124
      %v1182 = vld [vmem:[%s5] sm:$0xff]
      %v1183 = vld [vmem:[%s5 + $0x8] sm:$0xff]
      %v1184 = vld [vmem:[%s5 + $0x10] sm:$0xff]
      %v1185 = vld [vmem:[%s5 + $0x18] sm:$0xff]
      %v1186 = vld [vmem:[%s5 + $0x20] sm:$0xff]
      %v1187 = vld [vmem:[%s5 + $0x28] sm:$0xff]
      %v1188 = vld [vmem:[%s5 + $0x30] sm:$0xff]
      %v1189 = vld [vmem:[%s5 + $0x38] sm:$0xff]
      %v1190 = vld [vmem:[%s5 + $0x40] sm:$0xff]
      %v1191 = vld [vmem:[%s5 + $0x48] sm:$0xff]
      %v1192 = vld [vmem:[%s5 + $0x50] sm:$0xff]
      %v1193 = vld [vmem:[%s5 + $0x58] sm:$0xff]
      %v1194 = vld [vmem:[%s5 + $0x60] sm:$0xff]
      %v1195 = vld [vmem:[%s5 + $0x68] sm:$0xff]
      %v1196 = vld [vmem:[%s5 + $0x70] sm:$0xff]
      %v1197 = vld [vmem:[%s5 + $0x78] sm:$0xff]
      %v1198 = vld [vmem:[%s5 + $0x80] sm:$0xff]
      %v1199 = vld [vmem:[%s5 + $0x88] sm:$0xff]
      %v1200 = vld [vmem:[%s5 + $0x90] sm:$0xff]
      %v1201 = vld [vmem:[%s5 + $0x98] sm:$0xff]
      %v1202 = vld [vmem:[%s5 + $0xa0] sm:$0xff]
      %v1203 = vld [vmem:[%s5 + $0xa8] sm:$0xff]
      %v1204 = vld [vmem:[%s5 + $0xb0] sm:$0xff]
      %v1205 = vld [vmem:[%s5 + $0xb8] sm:$0xff]
      %v1206 = vld [vmem:[%s5 + $0xc0] sm:$0xff]
      %v1207 = vld [vmem:[%s5 + $0xc8] sm:$0xff]
      %v1208 = vld [vmem:[%s5 + $0xd0] sm:$0xff]
      %v1209 = vld [vmem:[%s5 + $0xd8] sm:$0xff]
      %v1210 = vld [vmem:[%s5 + $0xe0] sm:$0xff]
      %v1211 = vld [vmem:[%s5 + $0xe8] sm:$0xff]
      %v1212 = vld [vmem:[%s5 + $0xf0] sm:$0xff]
      %v1213 = vld [vmem:[%s5 + $0xf8] sm:$0xff]
      %v1214 = vld [vmem:[%s5 + $0x100] sm:$0xff]
      %v1215 = vld [vmem:[%s5 + $0x108] sm:$0xff]
      %v1216 = vld [vmem:[%s5 + $0x110] sm:$0xff]
      %v1217 = vld [vmem:[%s5 + $0x118] sm:$0xff]
      %v1218 = vld [vmem:[%s5 + $0x120] sm:$0xff]
      %v1219 = vld [vmem:[%s5 + $0x128] sm:$0xff]
      %v1220 = vld [vmem:[%s5 + $0x130] sm:$0xff]
      %v1221 = vld [vmem:[%s5 + $0x138] sm:$0xff]
      %v1222 = vld [vmem:[%s5 + $0x140] sm:$0xff]
      %v1223 = vld [vmem:[%s5 + $0x148] sm:$0xff]
      %v1224 = vld [vmem:[%s5 + $0x150] sm:$0xff]
      %v1225 = vld [vmem:[%s5 + $0x158] sm:$0xff]
      %v1226 = vld [vmem:[%s5 + $0x160] sm:$0xff]
      %v1227 = vld [vmem:[%s5 + $0x168] sm:$0xff]
      %v1228 = vld [vmem:[%s5 + $0x170] sm:$0xff]
      %v1229 = vld [vmem:[%s5 + $0x178] sm:$0xff]
      %1231 = vset.pattern.permute.xlu0 0
      %1232 = vperm.xlu0 %1231, %v1182
      %v1233 = vpop.permute.xlu0 %1232
      %1236 = vset.pattern.permute.xlu0 0
      %1237 = vperm.xlu0 %1236, %v1183
      %v1238 = vpop.permute.xlu0 %1237
      %1241 = vset.pattern.permute.xlu0 0
      %1242 = vperm.xlu0 %1241, %v1184
      %v1243 = vpop.permute.xlu0 %1242
      %1246 = vset.pattern.permute.xlu0 0
      %1247 = vperm.xlu0 %1246, %v1185
      %v1248 = vpop.permute.xlu0 %1247
      %1251 = vset.pattern.permute.xlu0 0
      %1252 = vperm.xlu0 %1251, %v1186
      %v1253 = vpop.permute.xlu0 %1252
      %1256 = vset.pattern.permute.xlu0 0
      %1257 = vperm.xlu0 %1256, %v1187
      %v1258 = vpop.permute.xlu0 %1257
      %1261 = vset.pattern.permute.xlu0 0
      %1262 = vperm.xlu0 %1261, %v1188
      %v1263 = vpop.permute.xlu0 %1262
      %1266 = vset.pattern.permute.xlu0 0
      %1267 = vperm.xlu0 %1266, %v1189
      %v1268 = vpop.permute.xlu0 %1267
      %1271 = vset.pattern.permute.xlu0 0
      %1272 = vperm.xlu0 %1271, %v1190
      %v1273 = vpop.permute.xlu0 %1272
      %1276 = vset.pattern.permute.xlu0 0
      %1277 = vperm.xlu0 %1276, %v1191
      %v1278 = vpop.permute.xlu0 %1277
      %1281 = vset.pattern.permute.xlu0 0
      %1282 = vperm.xlu0 %1281, %v1192
      %v1283 = vpop.permute.xlu0 %1282
      %1286 = vset.pattern.permute.xlu0 0
      %1287 = vperm.xlu0 %1286, %v1193
      %v1288 = vpop.permute.xlu0 %1287
      %1291 = vset.pattern.permute.xlu0 0
      %1292 = vperm.xlu0 %1291, %v1194
      %v1293 = vpop.permute.xlu0 %1292
      %1296 = vset.pattern.permute.xlu0 0
      %1297 = vperm.xlu0 %1296, %v1195
      %v1298 = vpop.permute.xlu0 %1297
      %1301 = vset.pattern.permute.xlu0 0
      %1302 = vperm.xlu0 %1301, %v1196
      %v1303 = vpop.permute.xlu0 %1302
      %1306 = vset.pattern.permute.xlu0 0
      %1307 = vperm.xlu0 %1306, %v1197
      %v1308 = vpop.permute.xlu0 %1307
      %1311 = vset.pattern.permute.xlu0 0
      %1312 = vperm.xlu0 %1311, %v1198
      %v1313 = vpop.permute.xlu0 %1312
      %1316 = vset.pattern.permute.xlu0 0
      %1317 = vperm.xlu0 %1316, %v1199
      %v1318 = vpop.permute.xlu0 %1317
      %1321 = vset.pattern.permute.xlu0 0
      %1322 = vperm.xlu0 %1321, %v1200
      %v1323 = vpop.permute.xlu0 %1322
      %1326 = vset.pattern.permute.xlu0 0
      %1327 = vperm.xlu0 %1326, %v1201
      %v1328 = vpop.permute.xlu0 %1327
      %1331 = vset.pattern.permute.xlu0 0
      %1332 = vperm.xlu0 %1331, %v1202
      %v1333 = vpop.permute.xlu0 %1332
      %1336 = vset.pattern.permute.xlu0 0
      %1337 = vperm.xlu0 %1336, %v1203
      %v1338 = vpop.permute.xlu0 %1337
      %1341 = vset.pattern.permute.xlu0 0
      %1342 = vperm.xlu0 %1341, %v1204
      %v1343 = vpop.permute.xlu0 %1342
      %1346 = vset.pattern.permute.xlu0 0
      %1347 = vperm.xlu0 %1346, %v1205
      %v1348 = vpop.permute.xlu0 %1347
      %1351 = vset.pattern.permute.xlu0 0
      %1352 = vperm.xlu0 %1351, %v1206
      %v1353 = vpop.permute.xlu0 %1352
      %1356 = vset.pattern.permute.xlu0 0
      %1357 = vperm.xlu0 %1356, %v1207
      %v1358 = vpop.permute.xlu0 %1357
      %1361 = vset.pattern.permute.xlu0 0
      %1362 = vperm.xlu0 %1361, %v1208
      %v1363 = vpop.permute.xlu0 %1362
      %1366 = vset.pattern.permute.xlu0 0
      %1367 = vperm.xlu0 %1366, %v1209
      %v1368 = vpop.permute.xlu0 %1367
      %1371 = vset.pattern.permute.xlu0 0
      %1372 = vperm.xlu0 %1371, %v1210
      %v1373 = vpop.permute.xlu0 %1372
      %1376 = vset.pattern.permute.xlu0 0
      %1377 = vperm.xlu0 %1376, %v1211
      %v1378 = vpop.permute.xlu0 %1377
      %1381 = vset.pattern.permute.xlu0 0
      %1382 = vperm.xlu0 %1381, %v1212
      %v1383 = vpop.permute.xlu0 %1382
      %1386 = vset.pattern.permute.xlu0 0
      %1387 = vperm.xlu0 %1386, %v1213
      %v1388 = vpop.permute.xlu0 %1387
      %1391 = vset.pattern.permute.xlu0 0
      %1392 = vperm.xlu0 %1391, %v1214
      %v1393 = vpop.permute.xlu0 %1392
      %1396 = vset.pattern.permute.xlu0 0
      %1397 = vperm.xlu0 %1396, %v1215
      %v1398 = vpop.permute.xlu0 %1397
      %1401 = vset.pattern.permute.xlu0 0
      %1402 = vperm.xlu0 %1401, %v1216
      %v1403 = vpop.permute.xlu0 %1402
      %1406 = vset.pattern.permute.xlu0 0
      %1407 = vperm.xlu0 %1406, %v1217
      %v1408 = vpop.permute.xlu0 %1407
      %1411 = vset.pattern.permute.xlu0 0
      %1412 = vperm.xlu0 %1411, %v1218
      %v1413 = vpop.permute.xlu0 %1412
      %1416 = vset.pattern.permute.xlu0 0
      %1417 = vperm.xlu0 %1416, %v1219
      %v1418 = vpop.permute.xlu0 %1417
      %1421 = vset.pattern.permute.xlu0 0
      %1422 = vperm.xlu0 %1421, %v1220
      %v1423 = vpop.permute.xlu0 %1422
      %1426 = vset.pattern.permute.xlu0 0
      %1427 = vperm.xlu0 %1426, %v1221
      %v1428 = vpop.permute.xlu0 %1427
      %1431 = vset.pattern.permute.xlu0 0
      %1432 = vperm.xlu0 %1431, %v1222
      %v1433 = vpop.permute.xlu0 %1432
      %1436 = vset.pattern.permute.xlu0 0
      %1437 = vperm.xlu0 %1436, %v1223
      %v1438 = vpop.permute.xlu0 %1437
      %1441 = vset.pattern.permute.xlu0 0
      %1442 = vperm.xlu0 %1441, %v1224
      %v1443 = vpop.permute.xlu0 %1442
      %1446 = vset.pattern.permute.xlu0 0
      %1447 = vperm.xlu0 %1446, %v1225
      %v1448 = vpop.permute.xlu0 %1447
      %1451 = vset.pattern.permute.xlu0 0
      %1452 = vperm.xlu0 %1451, %v1226
      %v1453 = vpop.permute.xlu0 %1452
      %1456 = vset.pattern.permute.xlu0 0
      %1457 = vperm.xlu0 %1456, %v1227
      %v1458 = vpop.permute.xlu0 %1457
      %1461 = vset.pattern.permute.xlu0 0
      %1462 = vperm.xlu0 %1461, %v1228
      %v1463 = vpop.permute.xlu0 %1462
      %1466 = vset.pattern.permute.xlu0 0
      %1467 = vperm.xlu0 %1466, %v1229
      %v1468 = vpop.permute.xlu0 %1467
      %v1518 = vunpack.c.l.b16 %v1126
      %v1519 = vunpack.c.l.b16 %v1127
      %v1520 = vunpack.c.l.b16 %v1128
      %v1521 = vunpack.c.l.b16 %v1129
      %v1522 = vunpack.c.l.b16 %v1130
      %v1523 = vunpack.c.l.b16 %v1131
      %v1524 = vunpack.c.l.b16 %v1132
      %v1525 = vunpack.c.l.b16 %v1133
      %v1526 = vunpack.c.l.b16 %v1134
      %v1527 = vunpack.c.l.b16 %v1135
      %v1528 = vunpack.c.l.b16 %v1136
      %v1529 = vunpack.c.l.b16 %v1137
      %v1530 = vunpack.c.l.b16 %v1138
      %v1531 = vunpack.c.l.b16 %v1139
      %v1532 = vunpack.c.l.b16 %v1140
      %v1533 = vunpack.c.l.b16 %v1141
      %v1534 = vunpack.c.l.b16 %v1142
      %v1535 = vunpack.c.l.b16 %v1143
      %v1536 = vunpack.c.l.b16 %v1144
      %v1537 = vunpack.c.l.b16 %v1145
      %v1538 = vunpack.c.l.b16 %v1146
      %v1539 = vunpack.c.l.b16 %v1147
      %v1540 = vunpack.c.l.b16 %v1148
      %v1541 = vunpack.c.l.b16 %v1149
      %v1542 = vunpack.c.l.b16 %v1150
      %v1543 = vunpack.c.l.b16 %v1151
      %v1544 = vunpack.c.l.b16 %v1152
      %v1545 = vunpack.c.l.b16 %v1153
      %v1546 = vunpack.c.l.b16 %v1154
      %v1547 = vunpack.c.l.b16 %v1155
      %v1548 = vunpack.c.l.b16 %v1156
      %v1549 = vunpack.c.l.b16 %v1157
      %v1550 = vunpack.c.l.b16 %v1158
      %v1551 = vunpack.c.l.b16 %v1159
      %v1552 = vunpack.c.l.b16 %v1160
      %v1553 = vunpack.c.l.b16 %v1161
      %v1554 = vunpack.c.l.b16 %v1162
      %v1555 = vunpack.c.l.b16 %v1163
      %v1556 = vunpack.c.l.b16 %v1164
      %v1557 = vunpack.c.l.b16 %v1165
      %v1558 = vunpack.c.l.b16 %v1166
      %v1559 = vunpack.c.l.b16 %v1167
      %v1560 = vunpack.c.l.b16 %v1168
      %v1561 = vunpack.c.l.b16 %v1169
      %v1562 = vunpack.c.l.b16 %v1170
      %v1563 = vunpack.c.l.b16 %v1171
      %v1564 = vunpack.c.l.b16 %v1172
      %v1565 = vunpack.c.l.b16 %v1173
      %v1566 = vpack.c.b16 %v1519, %v1518
      %v1567 = vpack.c.b16 %v1521, %v1520
      %v1568 = vpack.c.b16 %v1523, %v1522
      %v1569 = vpack.c.b16 %v1525, %v1524
      %v1570 = vpack.c.b16 %v1527, %v1526
      %v1571 = vpack.c.b16 %v1529, %v1528
      %v1572 = vpack.c.b16 %v1531, %v1530
      %v1573 = vpack.c.b16 %v1533, %v1532
      %v1574 = vpack.c.b16 %v1535, %v1534
      %v1575 = vpack.c.b16 %v1537, %v1536
      %v1576 = vpack.c.b16 %v1539, %v1538
      %v1577 = vpack.c.b16 %v1541, %v1540
      %v1578 = vpack.c.b16 %v1543, %v1542
      %v1579 = vpack.c.b16 %v1545, %v1544
      %v1580 = vpack.c.b16 %v1547, %v1546
      %v1581 = vpack.c.b16 %v1549, %v1548
      %v1582 = vpack.c.b16 %v1551, %v1550
      %v1583 = vpack.c.b16 %v1553, %v1552
      %v1584 = vpack.c.b16 %v1555, %v1554
      %v1585 = vpack.c.b16 %v1557, %v1556
      %v1586 = vpack.c.b16 %v1559, %v1558
      %v1587 = vpack.c.b16 %v1561, %v1560
      %v1588 = vpack.c.b16 %v1563, %v1562
      %v1589 = vpack.c.b16 %v1565, %v1564
      %1614 = vmatpush.bf16.msra.mxu0 %v1181
      %1615 = vmatpush.bf16.msra.mxu0 %v1180
      %1616 = vmatpush.bf16.msra.mxu0 %v1179
      %1617 = vmatpush.bf16.msra.mxu0 %v1178
      %1618 = vmatpush.bf16.msra.mxu0 %v1177
      %1619 = vmatpush.bf16.msra.mxu0 %v1176
      %1620 = vmatpush.bf16.msra.mxu0 %v1175
      %1621 = vmatpush.bf16.msra.mxu0 %v1174
      %1622 = vmatmul.bf16.gmra.mxu0 %v1566
      %v1623 = vpop.f32.mrf.mxu0
      %v1624 = vadd.f32 %v1233, %v1623
      %v1625 = vpop.f32.mrf.mxu0
      %v1626 = vadd.f32 %v1238, %v1625
      %1627 = vmatmul.bf16.gmra.mxu0 %v1567
      %v1628 = vpop.f32.mrf.mxu0
      %v1629 = vadd.f32 %v1243, %v1628
      %v1630 = vpop.f32.mrf.mxu0
      %v1631 = vadd.f32 %v1248, %v1630
      %1632 = vmatmul.bf16.gmra.mxu0 %v1568
      %v1633 = vpop.f32.mrf.mxu0
      %v1634 = vadd.f32 %v1253, %v1633
      %v1635 = vpop.f32.mrf.mxu0
      %v1636 = vadd.f32 %v1258, %v1635
      %1637 = vmatmul.bf16.gmra.mxu0 %v1569
      %v1638 = vpop.f32.mrf.mxu0
      %v1639 = vadd.f32 %v1263, %v1638
      %v1640 = vpop.f32.mrf.mxu0
      %v1641 = vadd.f32 %v1268, %v1640
      %1642 = vmatmul.bf16.gmra.mxu0 %v1570
      %v1643 = vpop.f32.mrf.mxu0
      %v1644 = vadd.f32 %v1273, %v1643
      %v1645 = vpop.f32.mrf.mxu0
      %v1646 = vadd.f32 %v1278, %v1645
      %1647 = vmatmul.bf16.gmra.mxu0 %v1571
      %v1648 = vpop.f32.mrf.mxu0
      %v1649 = vadd.f32 %v1283, %v1648
      %v1650 = vpop.f32.mrf.mxu0
      %v1651 = vadd.f32 %v1288, %v1650
      %1652 = vmatmul.bf16.gmra.mxu0 %v1572
      %v1653 = vpop.f32.mrf.mxu0
      %v1654 = vadd.f32 %v1293, %v1653
      %v1655 = vpop.f32.mrf.mxu0
      %v1656 = vadd.f32 %v1298, %v1655
      %1657 = vmatmul.bf16.gmra.mxu0 %v1573
      %v1658 = vpop.f32.mrf.mxu0
      %v1659 = vadd.f32 %v1303, %v1658
      %v1660 = vpop.f32.mrf.mxu0
      %v1661 = vadd.f32 %v1308, %v1660
      %1662 = vmatmul.bf16.gmra.mxu0 %v1574
      %v1663 = vpop.f32.mrf.mxu0
      %v1664 = vadd.f32 %v1313, %v1663
      %v1665 = vpop.f32.mrf.mxu0
      %v1666 = vadd.f32 %v1318, %v1665
      %1667 = vmatmul.bf16.gmra.mxu0 %v1575
      %v1668 = vpop.f32.mrf.mxu0
      %v1669 = vadd.f32 %v1323, %v1668
      %v1670 = vpop.f32.mrf.mxu0
      %v1671 = vadd.f32 %v1328, %v1670
      %1672 = vmatmul.bf16.gmra.mxu0 %v1576
      %v1673 = vpop.f32.mrf.mxu0
      %v1674 = vadd.f32 %v1333, %v1673
      %v1675 = vpop.f32.mrf.mxu0
      %v1676 = vadd.f32 %v1338, %v1675
      %1677 = vmatmul.bf16.gmra.mxu0 %v1577
      %v1678 = vpop.f32.mrf.mxu0
      %v1679 = vadd.f32 %v1343, %v1678
      %v1680 = vpop.f32.mrf.mxu0
      %v1681 = vadd.f32 %v1348, %v1680
      %1682 = vmatmul.bf16.gmra.mxu0 %v1578
      %v1683 = vpop.f32.mrf.mxu0
      %v1684 = vadd.f32 %v1353, %v1683
      %v1685 = vpop.f32.mrf.mxu0
      %v1686 = vadd.f32 %v1358, %v1685
      %1687 = vmatmul.bf16.gmra.mxu0 %v1579
      %v1688 = vpop.f32.mrf.mxu0
      %v1689 = vadd.f32 %v1363, %v1688
      %v1690 = vpop.f32.mrf.mxu0
      %v1691 = vadd.f32 %v1368, %v1690
      %1692 = vmatmul.bf16.gmra.mxu0 %v1580
      %v1693 = vpop.f32.mrf.mxu0
      %v1694 = vadd.f32 %v1373, %v1693
      %v1695 = vpop.f32.mrf.mxu0
      %v1696 = vadd.f32 %v1378, %v1695
      %1697 = vmatmul.bf16.gmra.mxu0 %v1581
      %v1698 = vpop.f32.mrf.mxu0
      %v1699 = vadd.f32 %v1383, %v1698
      %v1700 = vpop.f32.mrf.mxu0
      %v1701 = vadd.f32 %v1388, %v1700
      %1702 = vmatmul.bf16.gmra.mxu0 %v1582
      %v1703 = vpop.f32.mrf.mxu0
      %v1704 = vadd.f32 %v1393, %v1703
      %v1705 = vpop.f32.mrf.mxu0
      %v1706 = vadd.f32 %v1398, %v1705
      %1707 = vmatmul.bf16.gmra.mxu0 %v1583
      %v1708 = vpop.f32.mrf.mxu0
      %v1709 = vadd.f32 %v1403, %v1708
      %v1710 = vpop.f32.mrf.mxu0
      %v1711 = vadd.f32 %v1408, %v1710
      %1712 = vmatmul.bf16.gmra.mxu0 %v1584
      %v1713 = vpop.f32.mrf.mxu0
      %v1714 = vadd.f32 %v1413, %v1713
      %v1715 = vpop.f32.mrf.mxu0
      %v1716 = vadd.f32 %v1418, %v1715
      %1717 = vmatmul.bf16.gmra.mxu0 %v1585
      %v1718 = vpop.f32.mrf.mxu0
      %v1719 = vadd.f32 %v1423, %v1718
      %v1720 = vpop.f32.mrf.mxu0
      %v1721 = vadd.f32 %v1428, %v1720
      %1722 = vmatmul.bf16.gmra.mxu0 %v1586
      %v1723 = vpop.f32.mrf.mxu0
      %v1724 = vadd.f32 %v1433, %v1723
      %v1725 = vpop.f32.mrf.mxu0
      %v1726 = vadd.f32 %v1438, %v1725
      %1727 = vmatmul.bf16.gmra.mxu0 %v1587
      %v1728 = vpop.f32.mrf.mxu0
      %v1729 = vadd.f32 %v1443, %v1728
      %v1730 = vpop.f32.mrf.mxu0
      %v1731 = vadd.f32 %v1448, %v1730
      %1732 = vmatmul.bf16.gmra.mxu0 %v1588
      %v1733 = vpop.f32.mrf.mxu0
      %v1734 = vadd.f32 %v1453, %v1733
      %v1735 = vpop.f32.mrf.mxu0
      %v1736 = vadd.f32 %v1458, %v1735
      %1737 = vmatmul.bf16.gmra.mxu0 %v1589
      %v1738 = vpop.f32.mrf.mxu0
      %v1739 = vadd.f32 %v1463, %v1738
      %v1740 = vpop.f32.mrf.mxu0
      %v1741 = vadd.f32 %v1468, %v1740
      %1742 = vdwg.mxu0
      %v1743 = vmul.f32 %v1624, 0.088388346
      %v1744 = vmul.f32 %v1626, 0.088388346
      %v1745 = vmul.f32 %v1629, 0.088388346
      %v1746 = vmul.f32 %v1631, 0.088388346
      %v1747 = vmul.f32 %v1634, 0.088388346
      %v1748 = vmul.f32 %v1636, 0.088388346
      %v1749 = vmul.f32 %v1639, 0.088388346
      %v1750 = vmul.f32 %v1641, 0.088388346
      %v1751 = vmul.f32 %v1644, 0.088388346
      %v1752 = vmul.f32 %v1646, 0.088388346
      %v1753 = vmul.f32 %v1649, 0.088388346
      %v1754 = vmul.f32 %v1651, 0.088388346
      %v1755 = vmul.f32 %v1654, 0.088388346
      %v1756 = vmul.f32 %v1656, 0.088388346
      %v1757 = vmul.f32 %v1659, 0.088388346
      %v1758 = vmul.f32 %v1661, 0.088388346
      %v1759 = vpack.c.bf16 %v1744, %v1743
      %v1760 = vpack.c.bf16 %v1746, %v1745
      %v1761 = vpack.c.bf16 %v1748, %v1747
      %v1762 = vpack.c.bf16 %v1750, %v1749
      %v1763 = vpack.c.bf16 %v1752, %v1751
      %v1764 = vpack.c.bf16 %v1754, %v1753
      %v1765 = vpack.c.bf16 %v1756, %v1755
      %v1766 = vpack.c.bf16 %v1758, %v1757
      %v1767 = vpack.c.bf16 %v1666, %v1664
      %v1768 = vpack.c.bf16 %v1671, %v1669
      %v1769 = vpack.c.bf16 %v1676, %v1674
      %v1770 = vpack.c.bf16 %v1681, %v1679
      %v1771 = vpack.c.bf16 %v1686, %v1684
      %v1772 = vpack.c.bf16 %v1691, %v1689
      %v1773 = vpack.c.bf16 %v1696, %v1694
      %v1774 = vpack.c.bf16 %v1701, %v1699
      %v1775 = vpack.c.bf16 %v1706, %v1704
      %v1776 = vpack.c.bf16 %v1711, %v1709
      %v1777 = vpack.c.bf16 %v1716, %v1714
      %v1778 = vpack.c.bf16 %v1721, %v1719
      %v1779 = vpack.c.bf16 %v1726, %v1724
      %v1780 = vpack.c.bf16 %v1731, %v1729
      %v1781 = vpack.c.bf16 %v1736, %v1734
      %v1782 = vpack.c.bf16 %v1741, %v1739
      %v1783 = vlaneseq
      %v1784 = vshrl.u32 %v1783, 7
      %v1785 = vadd.s32 %v1784, 8
      %v1786 = vadd.s32 %v1784, 16
      %v1787 = vadd.s32 %v1784, 24
      %v1788 = vadd.s32 %v1784, 32
      %v1789 = vadd.s32 %v1784, 40
      %v1790 = vadd.s32 %v1784, 48
      %v1791 = vadd.s32 %v1784, 56
      %v1792 = vlaneseq
      %v1793 = vand.u32 %v1792, 127
      %vm1794 = vcmp.eq.s32.totalorder %v1784, %v1793
      %vm1795 = vcmp.eq.s32.totalorder %v1785, %v1793
      %vm1796 = vcmp.eq.s32.totalorder %v1786, %v1793
      %vm1797 = vcmp.eq.s32.totalorder %v1787, %v1793
      %vm1798 = vcmp.eq.s32.totalorder %v1788, %v1793
      %vm1799 = vcmp.eq.s32.totalorder %v1789, %v1793
      %vm1800 = vcmp.eq.s32.totalorder %v1790, %v1793
      %vm1801 = vcmp.eq.s32.totalorder %v1791, %v1793
      %v1802 = vsel %vm1794, 1, 0
      %v1803 = vsel %vm1795, 1, 0
      %v1804 = vsel %vm1796, 1, 0
      %v1805 = vsel %vm1797, 1, 0
      %v1806 = vsel %vm1798, 1, 0
      %v1807 = vsel %vm1799, 1, 0
      %v1808 = vsel %vm1800, 1, 0
      %v1809 = vsel %vm1801, 1, 0
      %v1810 = vcvt.s32.f32 %v1802
      %v1811 = vcvt.s32.f32 %v1803
      %v1812 = vcvt.s32.f32 %v1804
      %v1813 = vcvt.s32.f32 %v1805
      %v1814 = vcvt.s32.f32 %v1806
      %v1815 = vcvt.s32.f32 %v1807
      %v1816 = vcvt.s32.f32 %v1808
      %v1817 = vcvt.s32.f32 %v1809
      %v1818 = vpack.c.bf16 %v1811, %v1810
      %v1819 = vpack.c.bf16 %v1813, %v1812
      %v1820 = vpack.c.bf16 %v1815, %v1814
      %v1821 = vpack.c.bf16 %v1817, %v1816
      %v1823 = vsel %vm339, %v1818, 0
      %v1826 = vsel %vm339, %v1819, 0
      %v1829 = vsel %vm339, %v1820, 0
      %v1832 = vsel %vm339, %v1821, 0
      %v1835 = vsel %vm339, %v1759, 0
      %v1838 = vsel %vm339, %v1760, 0
      %v1841 = vsel %vm339, %v1761, 0
      %v1844 = vsel %vm339, %v1762, 0
      %v1847 = vsel %vm339, %v1763, 0
      %v1850 = vsel %vm339, %v1764, 0
      %v1853 = vsel %vm339, %v1765, 0
      %v1856 = vsel %vm339, %v1766, 0
      %1858 = vmatpush.bf16.xpose.msra.mxu0 %v1856
      %1859 = vmatpush.bf16.xpose.msra.mxu0 %v1853
      %1860 = vmatpush.bf16.xpose.msra.mxu0 %v1850
      %1861 = vmatpush.bf16.xpose.msra.mxu0 %v1847
      %1862 = vmatpush.bf16.xpose.msra.mxu0 %v1844
      %1863 = vmatpush.bf16.xpose.msra.mxu0 %v1841
      %1864 = vmatpush.bf16.xpose.msra.mxu0 %v1838
      %1865 = vmatpush.bf16.xpose.msra.mxu0 %v1835
      %1866 = vmatmul.bf16.gmra.mxu0 %v1823
      %v1867 = vpop.f32.mrf.mxu0
      %v1868 = vadd.f32 0.0, %v1867
      %v1869 = vpop.f32.mrf.mxu0
      %v1870 = vadd.f32 0.0, %v1869
      %1871 = vmatmul.bf16.gmra.mxu0 %v1826
      %v1872 = vpop.f32.mrf.mxu0
      %v1873 = vadd.f32 0.0, %v1872
      %v1874 = vpop.f32.mrf.mxu0
      %v1875 = vadd.f32 0.0, %v1874
      %1876 = vmatmul.bf16.gmra.mxu0 %v1829
      %v1877 = vpop.f32.mrf.mxu0
      %v1878 = vadd.f32 0.0, %v1877
      %v1879 = vpop.f32.mrf.mxu0
      %v1880 = vadd.f32 0.0, %v1879
      %1881 = vmatmul.bf16.gmra.mxu0 %v1832
      %v1882 = vpop.f32.mrf.mxu0
      %v1883 = vadd.f32 0.0, %v1882
      %v1884 = vpop.f32.mrf.mxu0
      %v1885 = vadd.f32 0.0, %v1884
      %1886 = vdwg.mxu0
      %v1887 = vpack.c.bf16 %v1870, %v1868
      %v1888 = vpack.c.bf16 %v1875, %v1873
      %v1889 = vpack.c.bf16 %v1880, %v1878
      %v1890 = vpack.c.bf16 %v1885, %v1883
      %1891 = vmatpush.bf16.msra.mxu0 %v1774
      %1892 = vmatpush.bf16.msra.mxu0 %v1773
      %1893 = vmatpush.bf16.msra.mxu0 %v1772
      %1894 = vmatpush.bf16.msra.mxu0 %v1771
      %1895 = vmatpush.bf16.msra.mxu0 %v1770
      %1896 = vmatpush.bf16.msra.mxu0 %v1769
      %1897 = vmatpush.bf16.msra.mxu0 %v1768
      %1898 = vmatpush.bf16.msra.mxu0 %v1767
      %1899 = vmatmul.bf16.gmra.mxu0 %v1887
      %v1900 = vpop.f32.mrf.mxu0
      %v1901 = vadd.f32 0.0, %v1900
      %v1902 = vpop.f32.mrf.mxu0
      %v1903 = vadd.f32 0.0, %v1902
      %1904 = vmatmul.bf16.gmra.mxu0 %v1888
      %v1905 = vpop.f32.mrf.mxu0
      %v1906 = vadd.f32 0.0, %v1905
      %v1907 = vpop.f32.mrf.mxu0
      %v1908 = vadd.f32 0.0, %v1907
      %1909 = vmatmul.bf16.gmra.mxu0 %v1889
      %v1910 = vpop.f32.mrf.mxu0
      %v1911 = vadd.f32 0.0, %v1910
      %v1912 = vpop.f32.mrf.mxu0
      %v1913 = vadd.f32 0.0, %v1912
      %1914 = vmatmul.bf16.gmra.mxu0 %v1890
      %v1915 = vpop.f32.mrf.mxu0
      %v1916 = vadd.f32 0.0, %v1915
      %v1917 = vpop.f32.mrf.mxu0
      %v1918 = vadd.f32 0.0, %v1917
      %1919 = vdwg.mxu0
      %v1920 = vsel %vm339, %v1901, -inf
      %1921 = vmax.xlane.f32.xlu0 %v1920
      %v1922 = vpop.xlane.xlu0 %1921
      %v1923 = vsel %vm339, %v1903, -inf
      %1924 = vmax.xlane.f32.xlu0 %v1923
      %v1925 = vpop.xlane.xlu0 %1924
      %v1926 = vsel %vm339, %v1906, -inf
      %1927 = vmax.xlane.f32.xlu0 %v1926
      %v1928 = vpop.xlane.xlu0 %1927
      %v1929 = vsel %vm339, %v1908, -inf
      %1930 = vmax.xlane.f32.xlu0 %v1929
      %v1931 = vpop.xlane.xlu0 %1930
      %v1932 = vsel %vm339, %v1911, -inf
      %1933 = vmax.xlane.f32.xlu0 %v1932
      %v1934 = vpop.xlane.xlu0 %1933
      %v1935 = vsel %vm339, %v1913, -inf
      %1936 = vmax.xlane.f32.xlu0 %v1935
      %v1937 = vpop.xlane.xlu0 %1936
      %v1938 = vsel %vm339, %v1916, -inf
      %1939 = vmax.xlane.f32.xlu0 %v1938
      %v1940 = vpop.xlane.xlu0 %1939
      %v1941 = vsel %vm339, %v1918, -inf
      %1942 = vmax.xlane.f32.xlu0 %v1941
      %v1943 = vpop.xlane.xlu0 %1942
      %v1944 = vsub.f32 %v1901, %v1922
      %v1945 = vsub.f32 %v1903, %v1925
      %v1946 = vsub.f32 %v1906, %v1928
      %v1947 = vsub.f32 %v1908, %v1931
      %v1948 = vsub.f32 %v1911, %v1934
      %v1949 = vsub.f32 %v1913, %v1937
      %v1950 = vsub.f32 %v1916, %v1940
      %v1951 = vsub.f32 %v1918, %v1943
      %v1952 = vmul.f32 %v1944, 1.442695
      %v1953 = vpow.pop %v1952
      %v1954 = vmul.f32 %v1945, 1.442695
      %v1955 = vpow.pop %v1954
      %v1956 = vmul.f32 %v1946, 1.442695
      %v1957 = vpow.pop %v1956
      %v1958 = vmul.f32 %v1947, 1.442695
      %v1959 = vpow.pop %v1958
      %v1960 = vmul.f32 %v1948, 1.442695
      %v1961 = vpow.pop %v1960
      %v1962 = vmul.f32 %v1949, 1.442695
      %v1963 = vpow.pop %v1962
      %v1964 = vmul.f32 %v1950, 1.442695
      %v1965 = vpow.pop %v1964
      %v1966 = vmul.f32 %v1951, 1.442695
      %v1967 = vpow.pop %v1966
      %v1968 = vsel %vm339, %v1953, 0.0
      %1969 = vadd.xlane.f32.xlu0 %v1968
      %v1970 = vpop.xlane.xlu0 %1969
      %v1971 = vsel %vm339, %v1955, 0.0
      %1972 = vadd.xlane.f32.xlu0 %v1971
      %v1973 = vpop.xlane.xlu0 %1972
      %v1974 = vsel %vm339, %v1957, 0.0
      %1975 = vadd.xlane.f32.xlu0 %v1974
      %v1976 = vpop.xlane.xlu0 %1975
      %v1977 = vsel %vm339, %v1959, 0.0
      %1978 = vadd.xlane.f32.xlu0 %v1977
      %v1979 = vpop.xlane.xlu0 %1978
      %v1980 = vsel %vm339, %v1961, 0.0
      %1981 = vadd.xlane.f32.xlu0 %v1980
      %v1982 = vpop.xlane.xlu0 %1981
      %v1983 = vsel %vm339, %v1963, 0.0
      %1984 = vadd.xlane.f32.xlu0 %v1983
      %v1985 = vpop.xlane.xlu0 %1984
      %v1986 = vsel %vm339, %v1965, 0.0
      %1987 = vadd.xlane.f32.xlu0 %v1986
      %v1988 = vpop.xlane.xlu0 %1987
      %v1989 = vsel %vm339, %v1967, 0.0
      %1990 = vadd.xlane.f32.xlu0 %v1989
      %v1991 = vpop.xlane.xlu0 %1990
      %v1992 = vrcp.pop %v1970
      %v1993 = vrcp.pop %v1973
      %v1994 = vrcp.pop %v1976
      %v1995 = vrcp.pop %v1979
      %v1996 = vrcp.pop %v1982
      %v1997 = vrcp.pop %v1985
      %v1998 = vrcp.pop %v1988
      %v1999 = vrcp.pop %v1991
      %v2000 = vmul.f32 %v1953, %v1992
      %v2001 = vmul.f32 %v1955, %v1993
      %v2002 = vmul.f32 %v1957, %v1994
      %v2003 = vmul.f32 %v1959, %v1995
      %v2004 = vmul.f32 %v1961, %v1996
      %v2005 = vmul.f32 %v1963, %v1997
      %v2006 = vmul.f32 %v1965, %v1998
      %v2007 = vmul.f32 %v1967, %v1999
      %v2008 = vpack.c.bf16 %v2001, %v2000
      %v2009 = vpack.c.bf16 %v2003, %v2002
      %v2010 = vpack.c.bf16 %v2005, %v2004
      %v2011 = vpack.c.bf16 %v2007, %v2006
      %v2013 = vsel %vm339, %v1775, 0
      %v2016 = vsel %vm339, %v1776, 0
      %v2019 = vsel %vm339, %v1777, 0
      %v2022 = vsel %vm339, %v1778, 0
      %v2025 = vsel %vm339, %v1779, 0
      %v2028 = vsel %vm339, %v1780, 0
      %v2031 = vsel %vm339, %v1781, 0
      %v2034 = vsel %vm339, %v1782, 0
      %v2037 = vsel %vm339, %v2008, 0
      %v2040 = vsel %vm339, %v2009, 0
      %v2043 = vsel %vm339, %v2010, 0
      %v2046 = vsel %vm339, %v2011, 0
      %2048 = vmatpush.bf16.xpose.msra.mxu0 0
      %2049 = vmatpush.bf16.xpose.msra.mxu0 0
      %2050 = vmatpush.bf16.xpose.msra.mxu0 0
      %2051 = vmatpush.bf16.xpose.msra.mxu0 0
      %2052 = vmatpush.bf16.xpose.msra.mxu0 %v2046
      %2053 = vmatpush.bf16.xpose.msra.mxu0 %v2043
      %2054 = vmatpush.bf16.xpose.msra.mxu0 %v2040
      %2055 = vmatpush.bf16.xpose.msra.mxu0 %v2037
      %2056 = vmatmul.bf16.gmra.mxu0 %v2013
      %v2057 = vpop.f32.mrf.mxu0
      %v2058 = vadd.f32 0.0, %v2057
      %v2059 = vpop.f32.mrf.mxu0
      %v2060 = vadd.f32 0.0, %v2059
      %2061 = vmatmul.bf16.gmra.mxu0 %v2016
      %v2062 = vpop.f32.mrf.mxu0
      %v2063 = vadd.f32 0.0, %v2062
      %v2064 = vpop.f32.mrf.mxu0
      %v2065 = vadd.f32 0.0, %v2064
      %2066 = vmatmul.bf16.gmra.mxu0 %v2019
      %v2067 = vpop.f32.mrf.mxu0
      %v2068 = vadd.f32 0.0, %v2067
      %v2069 = vpop.f32.mrf.mxu0
      %v2070 = vadd.f32 0.0, %v2069
      %2071 = vmatmul.bf16.gmra.mxu0 %v2022
      %v2072 = vpop.f32.mrf.mxu0
      %v2073 = vadd.f32 0.0, %v2072
      %v2074 = vpop.f32.mrf.mxu0
      %v2075 = vadd.f32 0.0, %v2074
      %2076 = vmatmul.bf16.gmra.mxu0 %v2025
      %v2077 = vpop.f32.mrf.mxu0
      %v2078 = vadd.f32 0.0, %v2077
      %v2079 = vpop.f32.mrf.mxu0
      %v2080 = vadd.f32 0.0, %v2079
      %2081 = vmatmul.bf16.gmra.mxu0 %v2028
      %v2082 = vpop.f32.mrf.mxu0
      %v2083 = vadd.f32 0.0, %v2082
      %v2084 = vpop.f32.mrf.mxu0
      %v2085 = vadd.f32 0.0, %v2084
      %2086 = vmatmul.bf16.gmra.mxu0 %v2031
      %v2087 = vpop.f32.mrf.mxu0
      %v2088 = vadd.f32 0.0, %v2087
      %v2089 = vpop.f32.mrf.mxu0
      %v2090 = vadd.f32 0.0, %v2089
      %2091 = vmatmul.bf16.gmra.mxu0 %v2034
      %v2092 = vpop.f32.mrf.mxu0
      %v2093 = vadd.f32 0.0, %v2092
      %v2094 = vpop.f32.mrf.mxu0
      %v2095 = vadd.f32 0.0, %v2094
      %2096 = vdwg.mxu0
      %v2097 = vld [vmem:[%s6] sm:$0xf]
      %v2098 = vld [vmem:[%s6 + $0x4] sm:$0xf]
      %v2099 = vld [vmem:[%s6 + $0x8] sm:$0xf]
      %v2100 = vld [vmem:[%s6 + $0xc] sm:$0xf]
      %v2101 = vld [vmem:[%s6 + $0x10] sm:$0xf]
      %v2102 = vld [vmem:[%s6 + $0x14] sm:$0xf]
      %v2103 = vld [vmem:[%s6 + $0x18] sm:$0xf]
      %v2104 = vld [vmem:[%s6 + $0x1c] sm:$0xf]
      %v2105 = vld [vmem:[%s6 + $0x20] sm:$0xf]
      %v2106 = vld [vmem:[%s6 + $0x24] sm:$0xf]
      %v2107 = vld [vmem:[%s6 + $0x28] sm:$0xf]
      %v2108 = vld [vmem:[%s6 + $0x2c] sm:$0xf]
      %v2109 = vld [vmem:[%s6 + $0x30] sm:$0xf]
      %v2110 = vld [vmem:[%s6 + $0x34] sm:$0xf]
      %v2111 = vld [vmem:[%s6 + $0x38] sm:$0xf]
      %v2112 = vld [vmem:[%s6 + $0x3c] sm:$0xf]
      %v2113 = vpack.c.bf16 %v2060, %v2058
      %v2114 = vpack.c.bf16 %v2065, %v2063
      %v2115 = vpack.c.bf16 %v2070, %v2068
      %v2116 = vpack.c.bf16 %v2075, %v2073
      %v2117 = vpack.c.bf16 %v2080, %v2078
      %v2118 = vpack.c.bf16 %v2085, %v2083
      %v2119 = vpack.c.bf16 %v2090, %v2088
      %v2120 = vpack.c.bf16 %v2095, %v2093
      %v2121 = vld [vmem:[%s7] sm:$0xff]
      %v2122 = vld [vmem:[%s7 + $0x8] sm:$0xff]
      %v2123 = vld [vmem:[%s7 + $0x10] sm:$0xff]
      %v2124 = vld [vmem:[%s7 + $0x18] sm:$0xff]
      %v2125 = vld [vmem:[%s7 + $0x20] sm:$0xff]
      %v2126 = vld [vmem:[%s7 + $0x28] sm:$0xff]
      %v2127 = vld [vmem:[%s7 + $0x30] sm:$0xff]
      %v2128 = vld [vmem:[%s7 + $0x38] sm:$0xff]
      %v2129 = vld [vmem:[%s7 + $0x40] sm:$0xff]
      %v2130 = vld [vmem:[%s7 + $0x48] sm:$0xff]
      %v2131 = vld [vmem:[%s7 + $0x50] sm:$0xff]
      %v2132 = vld [vmem:[%s7 + $0x58] sm:$0xff]
      %v2133 = vld [vmem:[%s7 + $0x60] sm:$0xff]
      %v2134 = vld [vmem:[%s7 + $0x68] sm:$0xff]
      %v2135 = vld [vmem:[%s7 + $0x70] sm:$0xff]
      %v2136 = vld [vmem:[%s7 + $0x78] sm:$0xff]
      %2138 = vset.pattern.permute.xlu0 0
      %2139 = vperm.xlu0 %2138, %v2121
      %v2140 = vpop.permute.xlu0 %2139
      %2143 = vset.pattern.permute.xlu0 0
      %2144 = vperm.xlu0 %2143, %v2122
      %v2145 = vpop.permute.xlu0 %2144
      %2148 = vset.pattern.permute.xlu0 0
      %2149 = vperm.xlu0 %2148, %v2123
      %v2150 = vpop.permute.xlu0 %2149
      %2153 = vset.pattern.permute.xlu0 0
      %2154 = vperm.xlu0 %2153, %v2124
      %v2155 = vpop.permute.xlu0 %2154
      %2158 = vset.pattern.permute.xlu0 0
      %2159 = vperm.xlu0 %2158, %v2125
      %v2160 = vpop.permute.xlu0 %2159
      %2163 = vset.pattern.permute.xlu0 0
      %2164 = vperm.xlu0 %2163, %v2126
      %v2165 = vpop.permute.xlu0 %2164
      %2168 = vset.pattern.permute.xlu0 0
      %2169 = vperm.xlu0 %2168, %v2127
      %v2170 = vpop.permute.xlu0 %2169
      %2173 = vset.pattern.permute.xlu0 0
      %2174 = vperm.xlu0 %2173, %v2128
      %v2175 = vpop.permute.xlu0 %2174
      %2178 = vset.pattern.permute.xlu0 0
      %2179 = vperm.xlu0 %2178, %v2129
      %v2180 = vpop.permute.xlu0 %2179
      %2183 = vset.pattern.permute.xlu0 0
      %2184 = vperm.xlu0 %2183, %v2130
      %v2185 = vpop.permute.xlu0 %2184
      %2188 = vset.pattern.permute.xlu0 0
      %2189 = vperm.xlu0 %2188, %v2131
      %v2190 = vpop.permute.xlu0 %2189
      %2193 = vset.pattern.permute.xlu0 0
      %2194 = vperm.xlu0 %2193, %v2132
      %v2195 = vpop.permute.xlu0 %2194
      %2198 = vset.pattern.permute.xlu0 0
      %2199 = vperm.xlu0 %2198, %v2133
      %v2200 = vpop.permute.xlu0 %2199
      %2203 = vset.pattern.permute.xlu0 0
      %2204 = vperm.xlu0 %2203, %v2134
      %v2205 = vpop.permute.xlu0 %2204
      %2208 = vset.pattern.permute.xlu0 0
      %2209 = vperm.xlu0 %2208, %v2135
      %v2210 = vpop.permute.xlu0 %2209
      %2213 = vset.pattern.permute.xlu0 0
      %2214 = vperm.xlu0 %2213, %v2136
      %v2215 = vpop.permute.xlu0 %2214
      %v2233 = vunpack.c.l.b16 %v2097
      %v2234 = vunpack.c.l.b16 %v2098
      %v2235 = vunpack.c.l.b16 %v2099
      %v2236 = vunpack.c.l.b16 %v2100
      %v2237 = vunpack.c.l.b16 %v2101
      %v2238 = vunpack.c.l.b16 %v2102
      %v2239 = vunpack.c.l.b16 %v2103
      %v2240 = vunpack.c.l.b16 %v2104
      %v2241 = vunpack.c.l.b16 %v2105
      %v2242 = vunpack.c.l.b16 %v2106
      %v2243 = vunpack.c.l.b16 %v2107
      %v2244 = vunpack.c.l.b16 %v2108
      %v2245 = vunpack.c.l.b16 %v2109
      %v2246 = vunpack.c.l.b16 %v2110
      %v2247 = vunpack.c.l.b16 %v2111
      %v2248 = vunpack.c.l.b16 %v2112
      %v2249 = vpack.c.b16 %v2234, %v2233
      %v2250 = vpack.c.b16 %v2236, %v2235
      %v2251 = vpack.c.b16 %v2238, %v2237
      %v2252 = vpack.c.b16 %v2240, %v2239
      %v2253 = vpack.c.b16 %v2242, %v2241
      %v2254 = vpack.c.b16 %v2244, %v2243
      %v2255 = vpack.c.b16 %v2246, %v2245
      %v2256 = vpack.c.b16 %v2248, %v2247
      %2265 = vmatpush.bf16.msra.mxu0 %v2120
      %2266 = vmatpush.bf16.msra.mxu0 %v2119
      %2267 = vmatpush.bf16.msra.mxu0 %v2118
      %2268 = vmatpush.bf16.msra.mxu0 %v2117
      %2269 = vmatpush.bf16.msra.mxu0 %v2116
      %2270 = vmatpush.bf16.msra.mxu0 %v2115
      %2271 = vmatpush.bf16.msra.mxu0 %v2114
      %2272 = vmatpush.bf16.msra.mxu0 %v2113
      %2273 = vmatmul.bf16.gmra.mxu0 %v2249
      %v2274 = vpop.f32.mrf.mxu0
      %v2275 = vadd.f32 %v2140, %v2274
      %v2276 = vpop.f32.mrf.mxu0
      %v2277 = vadd.f32 %v2145, %v2276
      %2278 = vmatmul.bf16.gmra.mxu0 %v2250
      %v2279 = vpop.f32.mrf.mxu0
      %v2280 = vadd.f32 %v2150, %v2279
      %v2281 = vpop.f32.mrf.mxu0
      %v2282 = vadd.f32 %v2155, %v2281
      %2283 = vmatmul.bf16.gmra.mxu0 %v2251
      %v2284 = vpop.f32.mrf.mxu0
      %v2285 = vadd.f32 %v2160, %v2284
      %v2286 = vpop.f32.mrf.mxu0
      %v2287 = vadd.f32 %v2165, %v2286
      %2288 = vmatmul.bf16.gmra.mxu0 %v2252
      %v2289 = vpop.f32.mrf.mxu0
      %v2290 = vadd.f32 %v2170, %v2289
      %v2291 = vpop.f32.mrf.mxu0
      %v2292 = vadd.f32 %v2175, %v2291
      %2293 = vmatmul.bf16.gmra.mxu0 %v2253
      %v2294 = vpop.f32.mrf.mxu0
      %v2295 = vadd.f32 %v2180, %v2294
      %v2296 = vpop.f32.mrf.mxu0
      %v2297 = vadd.f32 %v2185, %v2296
      %2298 = vmatmul.bf16.gmra.mxu0 %v2254
      %v2299 = vpop.f32.mrf.mxu0
      %v2300 = vadd.f32 %v2190, %v2299
      %v2301 = vpop.f32.mrf.mxu0
      %v2302 = vadd.f32 %v2195, %v2301
      %2303 = vmatmul.bf16.gmra.mxu0 %v2255
      %v2304 = vpop.f32.mrf.mxu0
      %v2305 = vadd.f32 %v2200, %v2304
      %v2306 = vpop.f32.mrf.mxu0
      %v2307 = vadd.f32 %v2205, %v2306
      %2308 = vmatmul.bf16.gmra.mxu0 %v2256
      %v2309 = vpop.f32.mrf.mxu0
      %v2310 = vadd.f32 %v2210, %v2309
      %v2311 = vpop.f32.mrf.mxu0
      %v2312 = vadd.f32 %v2215, %v2311
      %2313 = vdwg.mxu0
      %v2314 = vadd.f32 %v2275, %v307
      %v2315 = vadd.f32 %v2277, %v308
      %v2316 = vadd.f32 %v2280, %v309
      %v2317 = vadd.f32 %v2282, %v310
      %v2318 = vadd.f32 %v2285, %v311
      %v2319 = vadd.f32 %v2287, %v312
      %v2320 = vadd.f32 %v2290, %v313
      %v2321 = vadd.f32 %v2292, %v314
      %v2322 = vadd.f32 %v2295, %v315
      %v2323 = vadd.f32 %v2297, %v316
      %v2324 = vadd.f32 %v2300, %v317
      %v2325 = vadd.f32 %v2302, %v318
      %v2326 = vadd.f32 %v2305, %v319
      %v2327 = vadd.f32 %v2307, %v320
      %v2328 = vadd.f32 %v2310, %v321
      %v2329 = vadd.f32 %v2312, %v322
      %2330 = vst.msk [vmem:[%s305] sm:$0xff] %vm339, %v2314
      %2331 = vst.msk [vmem:[%s305 + $0x8] sm:$0xff] %vm339, %v2315
      %2332 = vst.msk [vmem:[%s305 + $0x10] sm:$0xff] %vm339, %v2316
      %2333 = vst.msk [vmem:[%s305 + $0x18] sm:$0xff] %vm339, %v2317
      %2334 = vst.msk [vmem:[%s305 + $0x20] sm:$0xff] %vm339, %v2318
      %2335 = vst.msk [vmem:[%s305 + $0x28] sm:$0xff] %vm339, %v2319
      %2336 = vst.msk [vmem:[%s305 + $0x30] sm:$0xff] %vm339, %v2320
      %2337 = vst.msk [vmem:[%s305 + $0x38] sm:$0xff] %vm339, %v2321
      %2338 = vst.msk [vmem:[%s305 + $0x40] sm:$0xff] %vm339, %v2322
      %2339 = vst.msk [vmem:[%s305 + $0x48] sm:$0xff] %vm339, %v2323
      %2340 = vst.msk [vmem:[%s305 + $0x50] sm:$0xff] %vm339, %v2324
      %2341 = vst.msk [vmem:[%s305 + $0x58] sm:$0xff] %vm339, %v2325
      %2342 = vst.msk [vmem:[%s305 + $0x60] sm:$0xff] %vm339, %v2326
      %2343 = vst.msk [vmem:[%s305 + $0x68] sm:$0xff] %vm339, %v2327
      %2344 = vst.msk [vmem:[%s305 + $0x70] sm:$0xff] %vm339, %v2328
      %2345 = vst.msk [vmem:[%s305 + $0x78] sm:$0xff] %vm339, %v2329
      %p2346 = scmp.lt.s32.totalorder %s19, 1
      %s2347 = scalar_select %p2346, %s19, 1
      %s2348 = smul.addr %s2347, 16
      %s2349 = smul.addr %s2348, 8
      %s2350 = scalar_lea.vmem %s8, %s2349
      // Predicated region
      $region53: #{attention_forward.1} parent=51 // pred_check
        %p2351 = pneg %p210
      $region54: #{attention_forward.1} parent=51 // pred_check_branch
        %2353 = sbr.rel (%p2351) target = $region56
      $region55: #{attention_forward.1} parent=51 // pred_region
        _
      $region56: #{attention_forward.1} parent=51 // pred_fallthru
        _
    $region52: #{attention_forward.1} parent=5 // pred_fallthru
      _
    %p2354 = scmp.le.s32.totalorder 2, %s14
    // Predicated region
    $region57: #{attention_forward.1} parent=5 // pred_check
      %p2355 = pneg %p2354
    $region58: #{attention_forward.1} parent=5 // pred_check_branch
      %2357 = sbr.rel (%p2355) target = $region60
    $region59: #{attention_forward.1} parent=5 // pred_region
      %s2358 = ssub.s32 %s14, 2
      // Predicated region
      $region61: #{attention_forward.1} parent=59 // pred_check
        %p2359 = pneg %p216
      $region62: #{attention_forward.1} parent=59 // pred_check_branch
        %2361 = sbr.rel (%p2359) target = $region64
      $region63: #{attention_forward.1} parent=59 // pred_region
        %p2362 = scmp.lt.s32.totalorder %s20, 1
        %s2363 = scalar_select %p2362, %s20, 1
        %s2364 = smul.addr %s2363, 16
        %s2365 = smul.addr %s2364, 8
        %s2366 = scalar_lea.vmem %s8, %s2365
      $region64: #{attention_forward.1} parent=59 // pred_fallthru
        _
    $region60: #{attention_forward.1} parent=5 // pred_fallthru
      _
  $region6: #{attention_forward.1} parent=0 // loop_footer
    %s18 = sadd.s32 1, %s14
  $region7: #{attention_forward.1} parent=0 // loop_footer_branch
    %13 = sbr.rel target = $region3
  $region8: #{attention_forward.1} parent=0 // loop_exit
    _

</llo_original>
